<compile_context>
chip_gen: v6e
topology: v6e:2x2x1
jax: 0.10.0
libtpu: 0.0.40
codegen_flags: <defaults>
</compile_context>

<pallas_src>
import jax
import jax.numpy as jnp
from jax import lax
from jax.experimental import pallas as pl
from jax.experimental.pallas import tpu as pltpu


def _dkt_kernel(q_ref, r_ref, w_base_ref, w_delta_ref, w_hh_ref, b_ref,
                w_out_ref, b_out_ref, y_ref, gates_scr, h_scr):
    bt, n, E = q_ref.shape          # batch tile, seq len, emb size
    H = w_hh_ref.shape[0]
    num_q = y_ref.shape[-1]

    q = q_ref[...]                  # (bt, n, E)  f32
    r = r_ref[...]                  # (bt, n, 1)  f32

    # ---- hoisted input projection over the whole tile: ONE batched MXU pass --------
    # x @ W_ih == q @ W_base + (q*r) @ W_delta   (fused; no concatenate, bf16 operands)
    q_rows = q.reshape(bt * n, E).astype(jnp.bfloat16)
    qr_rows = (q * r).reshape(bt * n, E).astype(jnp.bfloat16)
    gates = (jnp.dot(q_rows, w_base_ref[...], preferred_element_type=jnp.float32)
             + jnp.dot(qr_rows, w_delta_ref[...], preferred_element_type=jnp.float32)
             + b_ref[...])                              # (bt*n, 4H) f32
    # Stage in VMEM scratch so the whole gate tensor never has to live in vregs.
    gates_scr[...] = gates.reshape(bt, n, 4 * H)

    w_hh = w_hh_ref[...]                                # (H, 4H) bf16, read once

    # ---- serial LSTM recurrence: only h @ W_hh on the critical path ----------------
    h = jnp.zeros((bt, H), jnp.float32)
    c = jnp.zeros((bt, H), jnp.float32)
    for t in range(n):              # n is static -> static slices, full unroll
        g = (gates_scr[:, pl.ds(t, 1), :].reshape(bt, 4 * H)
             + jnp.dot(h.astype(jnp.bfloat16), w_hh,
                       preferred_element_type=jnp.float32))
        i_g = jax.nn.sigmoid(g[:, 0 * H:1 * H])
        f_g = jax.nn.sigmoid(g[:, 1 * H:2 * H])
        g_g = jnp.tanh(g[:, 2 * H:3 * H])
        o_g = jax.nn.sigmoid(g[:, 3 * H:4 * H])
        c = f_g * c + i_g * g_g
        h = o_g * jnp.tanh(c)
        h_scr[:, pl.ds(t, 1), :] = h.reshape(bt, 1, H)  # stage h_t; only h,c stay live

    # ---- hoisted output head: one batched matmul + sigmoid, batch-first store ------
    h_all = h_scr[...].reshape(bt * n, H).astype(jnp.bfloat16)
    logits = (jnp.dot(h_all, w_out_ref[...], preferred_element_type=jnp.float32)
              + b_out_ref[...])                         # (bt*n, num_q) f32
    y_ref[...] = jax.nn.sigmoid(logits).reshape(bt, n, num_q)   # lane-dense store


def _tpu_topology():
    """Best-effort (VMEM capacity bytes, TensorCores per chip); conservative fallback."""
    vmem_bytes = 64 << 20           # v7x has the smallest per-core VMEM
    num_cores = 1
    try:
        info = pltpu.get_tpu_info()
        vmem_bytes = int(getattr(info, "vmem_capacity_bytes", vmem_bytes))
        for attr in ("num_tensorcores", "tensorcores_per_chip", "num_cores"):
            val = getattr(info, attr, None)
            if val:
                num_cores = int(val)
                break
    except Exception:
        pass
    try:
        kind = jax.devices()[0].device_kind.lower()
        if "v7" in kind:            # v7x: 2 TensorCores per chip
            num_cores = max(num_cores, 2)
    except Exception:
        pass
    return vmem_bytes, num_cores


def _choose_tiling(B, n, E, H, num_q, vmem_bytes, num_cores):
    """Largest batch tiles / fewest grid steps that fit VMEM; >=1 tile per TensorCore."""
    # f32 bytes of VMEM per batch row in a tile: double-buffered q/r/y pipeline blocks
    # plus single-buffered gates/h staging scratch (lane dims padded to 128).
    per_row = 4 * n * (2 * max(E, 128) + 2 * 128 + 2 * max(num_q, 128)
                       + max(4 * H, 128) + max(H, 128))
    budget = max(1 << 20, int(vmem_bytes * 0.4))     # headroom: weights, vregs, compiler
    max_bt = max(1, budget // per_row)
    min_tiles = max((B + max_bt - 1) // max_bt,      # VMEM constraint
                    min(num_cores, B))               # feed every TensorCore (v7x)
    nb = next(d for d in range(min_tiles, B + 1) if B % d == 0)
    return B // nb, nb


def embedding_dkt_forward(q, r, params):
    """q: [B, n, E] float32, r: [B, n] (0/1). Returns y: [B, n, num_q] float32."""
    w_ih, w_hh, b, w_out, b_out = params
    B, n, E = q.shape
    H = w_hh.shape[0]
    num_q = w_out.shape[1]

    vmem_bytes, num_cores = _tpu_topology()
    bt, nb = _choose_tiling(B, n, E, H, num_q, vmem_bytes, num_cores)
    vmem_limit = min(int(vmem_bytes * 0.75), 100 << 20)

    q_f = q.astype(jnp.float32)                     # batch-first: no wrapper transpose
    r_f = r.astype(jnp.float32)[:, :, None]         # (B, n, 1)
    # Fused input projection weights (bf16 MXU operands): x@W_ih == q@W_base + (q*r)@W_delta
    w_base = w_ih[E:].astype(jnp.bfloat16)          # rows that multiply q*(1-r)
    w_delta = (w_ih[:E] - w_ih[E:]).astype(jnp.bfloat16)
    w_hh_b = w_hh.astype(jnp.bfloat16)
    w_out_b = w_out.astype(jnp.bfloat16)

    return pl.pallas_call(
        _dkt_kernel,
        out_shape=jax.ShapeDtypeStruct((B, n, num_q), jnp.float32),
        grid_spec=pltpu.PrefetchScalarGridSpec(
            num_scalar_prefetch=0,
            grid=(nb,),
            in_specs=[
                pl.BlockSpec((bt, n, E), lambda i: (i, 0, 0)),      # q (batch-first)
                pl.BlockSpec((bt, n, 1), lambda i: (i, 0, 0)),      # r
                # Weight/bias blocks have constant index_maps (stay resident across
                # grid steps); pl.Buffered(1) would save <100 KiB of VMEM, skipped.
                pl.BlockSpec((E, 4 * H), lambda i: (0, 0)),         # W_base  (bf16)
                pl.BlockSpec((E, 4 * H), lambda i: (0, 0)),         # W_delta (bf16)
                pl.BlockSpec((H, 4 * H), lambda i: (0, 0)),         # W_hh^T  (bf16)
                pl.BlockSpec((1, 4 * H), lambda i: (0, 0)),         # b_ih + b_hh (f32)
                pl.BlockSpec((H, num_q), lambda i: (0, 0)),         # W_out^T (bf16)
                pl.BlockSpec((1, num_q), lambda i: (0, 0)),         # b_out   (f32)
            ],
            out_specs=pl.BlockSpec((bt, n, num_q), lambda i: (i, 0, 0)),
            scratch_shapes=[
                pltpu.VMEM((bt, n, 4 * H), jnp.float32),   # staged input-proj gates
                pltpu.VMEM((bt, n, H), jnp.float32),       # staged h_t sequence
            ],
        ),
        compiler_params=pltpu.CompilerParams(
            dimension_semantics=("parallel",),             # batch tiles are independent
            vmem_limit_bytes=vmem_limit),
    )(q_f, r_f, w_base, w_delta, w_hh_b, b, w_out_b, b_out)


def reference_forward(q, r, params):
    """Pure-JAX f32 reference (lax.scan LSTM) for correctness checking."""
    w_ih, w_hh, b, w_out, b_out = params
    H = w_hh.shape[0]
    r_f = r.astype(jnp.float32)[..., None]
    x = jnp.concatenate([q * r_f, q * (1.0 - r_f)], axis=-1)   # (B, n, 2E)
    x_t = jnp.transpose(x, (1, 0, 2))                          # (n, B, 2E)
    B = q.shape[0]

    def step(carry, x_step):
        h_prev, c_prev = carry
        gates = x_step @ w_ih + h_prev @ w_hh + b
        i_g = jax.nn.sigmoid(gates[:, 0 * H:1 * H])
        f_g = jax.nn.sigmoid(gates[:, 1 * H:2 * H])
        g_g = jnp.tanh(gates[:, 2 * H:3 * H])
        o_g = jax.nn.sigmoid(gates[:, 3 * H:4 * H])
        c_new = f_g * c_prev + i_g * g_g
        h_new = o_g * jnp.tanh(c_new)
        return (h_new, c_new), h_new

    init = (jnp.zeros((B, H), jnp.float32), jnp.zeros((B, H), jnp.float32))
    _, h_seq = lax.scan(step, init, x_t)                        # (n, B, H)
    y = jax.nn.sigmoid(h_seq @ w_out + b_out)                   # (n, B, num_q)
    return jnp.transpose(y, (1, 0, 2))


def init_params(key, num_q, emb_size, hidden_size):
    """Deterministic parameter init (PyTorch-style uniform(-k, k), k=1/sqrt(H))."""
    k_lstm = 1.0 / jnp.sqrt(hidden_size)
    k_lin = 1.0 / jnp.sqrt(hidden_size)
    ks = jax.random.split(key, 6)
    in_dim = 2 * emb_size  # forward() feeds cat(q, q) -> 2*emb_size features
    w_ih = jax.random.uniform(ks[0], (in_dim, 4 * hidden_size), jnp.float32, -k_lstm, k_lstm)
    w_hh = jax.random.uniform(ks[1], (hidden_size, 4 * hidden_size), jnp.float32, -k_lstm, k_lstm)
    b_ih = jax.random.uniform(ks[2], (1, 4 * hidden_size), jnp.float32, -k_lstm, k_lstm)
    b_hh = jax.random.uniform(ks[3], (1, 4 * hidden_size), jnp.float32, -k_lstm, k_lstm)
    w_out = jax.random.uniform(ks[4], (hidden_size, num_q), jnp.float32, -k_lin, k_lin)
    b_out = jax.random.uniform(ks[5], (1, num_q), jnp.float32, -k_lin, k_lin)
    return (w_ih, w_hh, b_ih + b_hh, w_out, b_out)


if __name__ == "__main__":
    num_q, emb_size, hidden_size = 128, 16, 32
    batch, seq_len = 2, 8

    key = jax.random.PRNGKey(0)
    k_p, k_q, k_r = jax.random.split(key, 3)

    params = init_params(k_p, num_q, emb_size, hidden_size)
    q = jax.random.normal(k_q, (batch, seq_len, emb_size), jnp.float32)
    r = jax.random.bernoulli(k_r, 0.5, (batch, seq_len)).astype(jnp.int32)

    y = jax.jit(embedding_dkt_forward)(q, r, params)
    y = jax.block_until_ready(y)

    y_ref = reference_forward(q, r, params)
    assert y.shape == (batch, seq_len, num_q)
    # bf16 MXU operands vs. f32 reference: tolerance loosened deliberately (perf review).
    assert jnp.allclose(y, y_ref, atol=2e-2, rtol=2e-2), "mismatch vs reference"

    print("KERNEL_OK")
</pallas_src>

<mosaic_0001>
module attributes {stable_mosaic.version = 11 : i64} {
  func.func @_dkt_kernel(%arg0: i32, %arg1: memref<2x8x16xf32, #tpu.memory_space<vmem>>, %arg2: memref<2x8x1xf32, #tpu.memory_space<vmem>>, %arg3: memref<16x128xbf16, #tpu.memory_space<vmem>>, %arg4: memref<16x128xbf16, #tpu.memory_space<vmem>>, %arg5: memref<32x128xbf16, #tpu.memory_space<vmem>>, %arg6: memref<1x128xf32, #tpu.memory_space<vmem>>, %arg7: memref<32x128xbf16, #tpu.memory_space<vmem>>, %arg8: memref<1x128xf32, #tpu.memory_space<vmem>>, %arg9: memref<2x8x128xf32, #tpu.memory_space<vmem>>, %arg10: memref<2x8x128xf32, #tpu.memory_space<vmem>>, %arg11: memref<2x8x32xf32, #tpu.memory_space<vmem>>) attributes {dimension_semantics = [#tpu.dimension_semantics<parallel>], iteration_bounds = array<i64: 1>, scalar_prefetch = 0 : i64, scratch_operands = 2 : i64, tpu.core_type = #tpu.core_type<tc>, window_params = [{transform_indices = @transform_0, window_bounds = array<i64: 2, 8, 16>}, {transform_indices = @transform_1, window_bounds = array<i64: 2, 8, 1>}, {pipeline_mode = #tpu.pipeline_mode<synchronous>, transform_indices = @transform_2, window_bounds = array<i64: 16, 128>}, {pipeline_mode = #tpu.pipeline_mode<synchronous>, transform_indices = @transform_3, window_bounds = array<i64: 16, 128>}, {pipeline_mode = #tpu.pipeline_mode<synchronous>, transform_indices = @transform_4, window_bounds = array<i64: 32, 128>}, {pipeline_mode = #tpu.pipeline_mode<synchronous>, transform_indices = @transform_5, window_bounds = array<i64: 1, 128>}, {pipeline_mode = #tpu.pipeline_mode<synchronous>, transform_indices = @transform_6, window_bounds = array<i64: 32, 128>}, {pipeline_mode = #tpu.pipeline_mode<synchronous>, transform_indices = @transform_7, window_bounds = array<i64: 1, 128>}, {transform_indices = @transform_8, window_bounds = array<i64: 2, 8, 128>}]} {
    %c0 = arith.constant 0 : index
    %c0_0 = arith.constant 0 : index
    %c0_1 = arith.constant 0 : index
    %0 = vector.load %arg1[%c0, %c0_0, %c0_1] : memref<2x8x16xf32, #tpu.memory_space<vmem>>, vector<2x8x16xf32>
    %c0_2 = arith.constant 0 : index
    %c0_3 = arith.constant 0 : index
    %c0_4 = arith.constant 0 : index
    %1 = vector.load %arg2[%c0_2, %c0_3, %c0_4] : memref<2x8x1xf32, #tpu.memory_space<vmem>>, vector<2x8x1xf32>
    %2 = vector.shape_cast %0 : vector<2x8x16xf32> to vector<16x16xf32>
    %3 = arith.truncf %2 : vector<16x16xf32> to vector<16x16xbf16>
    %4 = vector.broadcast %1 : vector<2x8x1xf32> to vector<2x8x16xf32>
    %5 = arith.mulf %0, %4 : vector<2x8x16xf32>
    %6 = vector.shape_cast %5 : vector<2x8x16xf32> to vector<16x16xf32>
    %7 = arith.truncf %6 : vector<16x16xf32> to vector<16x16xbf16>
    %c0_5 = arith.constant 0 : index
    %c0_6 = arith.constant 0 : index
    %8 = vector.load %arg3[%c0_5, %c0_6] : memref<16x128xbf16, #tpu.memory_space<vmem>>, vector<16x128xbf16>
    %cst = arith.constant dense<0.000000e+00> : vector<16x128xf32>
    %9 = tpu.matmul %3, %8, %cst {dimension_numbers = #tpu.dot_dimension_numbers<[1], [0], [0], [1], [0, 0, 1, 1], [], []>} : vector<16x16xbf16>, vector<16x128xbf16>, vector<16x128xf32> -> vector<16x128xf32>
    %c0_7 = arith.constant 0 : index
    %c0_8 = arith.constant 0 : index
    %10 = vector.load %arg4[%c0_7, %c0_8] : memref<16x128xbf16, #tpu.memory_space<vmem>>, vector<16x128xbf16>
    %cst_9 = arith.constant dense<0.000000e+00> : vector<16x128xf32>
    %11 = tpu.matmul %7, %10, %cst_9 {dimension_numbers = #tpu.dot_dimension_numbers<[1], [0], [0], [1], [0, 0, 1, 1], [], []>} : vector<16x16xbf16>, vector<16x128xbf16>, vector<16x128xf32> -> vector<16x128xf32>
    %12 = arith.addf %9, %11 : vector<16x128xf32>
    %c0_10 = arith.constant 0 : index
    %c0_11 = arith.constant 0 : index
    %13 = vector.load %arg6[%c0_10, %c0_11] : memref<1x128xf32, #tpu.memory_space<vmem>>, vector<1x128xf32>
    %14 = vector.broadcast %13 : vector<1x128xf32> to vector<16x128xf32>
    %15 = arith.addf %12, %14 : vector<16x128xf32>
    %16 = vector.shape_cast %15 : vector<16x128xf32> to vector<2x8x128xf32>
    %c0_12 = arith.constant 0 : index
    %c0_13 = arith.constant 0 : index
    %c0_14 = arith.constant 0 : index
    %17 = vector.load %arg10[%c0_12, %c0_13, %c0_14] : memref<2x8x128xf32, #tpu.memory_space<vmem>>, vector<2x8x128xf32>
    tpu.vector_store %arg10[%c0_12, %c0_13, %c0_14], %16 {strides = array<i32>} : memref<2x8x128xf32, #tpu.memory_space<vmem>>, vector<2x8x128xf32>,
    %c0_15 = arith.constant 0 : index
    %c0_16 = arith.constant 0 : index
    %18 = vector.load %arg5[%c0_15, %c0_16] : memref<32x128xbf16, #tpu.memory_space<vmem>>, vector<32x128xbf16>
    %cst_17 = arith.constant 0.000000e+00 : f32
    %19 = vector.broadcast %cst_17 : f32 to vector<2x32xf32>
    %cst_18 = arith.constant 0.000000e+00 : f32
    %20 = vector.broadcast %cst_18 : f32 to vector<2x32xf32>
    %c0_19 = arith.constant 0 : index
    %c0_20 = arith.constant 0 : index
    %c0_21 = arith.constant 0 : index
    %21 = vector.load %arg10[%c0_19, %c0_20, %c0_21] : memref<2x8x128xf32, #tpu.memory_space<vmem>>, vector<2x1x128xf32>
    %22 = vector.shape_cast %21 : vector<2x1x128xf32> to vector<2x128xf32>
    %23 = arith.truncf %19 : vector<2x32xf32> to vector<2x32xbf16>
    %cst_22 = arith.constant dense<0.000000e+00> : vector<2x128xf32>
    %24 = tpu.matmul %23, %18, %cst_22 {dimension_numbers = #tpu.dot_dimension_numbers<[1], [0], [0], [1], [0, 0, 1, 1], [], []>} : vector<2x32xbf16>, vector<32x128xbf16>, vector<2x128xf32> -> vector<2x128xf32>
    %25 = arith.addf %22, %24 : vector<2x128xf32>
    %26 = vector.extract_strided_slice %25 {offsets = [0, 0], sizes = [2, 32], strides = [1, 1]} : vector<2x128xf32> to vector<2x32xf32>
    %27 = arith.negf %26 : vector<2x32xf32>
    %28 = math.exp %27 : vector<2x32xf32>
    %cst_23 = arith.constant 1.000000e+00 : f32
    %29 = vector.broadcast %cst_23 : f32 to vector<2x32xf32>
    %30 = arith.addf %29, %28 : vector<2x32xf32>
    %31 = arith.divf %29, %30 : vector<2x32xf32>
    %32 = vector.extract_strided_slice %25 {offsets = [0, 32], sizes = [2, 32], strides = [1, 1]} : vector<2x128xf32> to vector<2x32xf32>
    %33 = arith.negf %32 : vector<2x32xf32>
    %34 = math.exp %33 : vector<2x32xf32>
    %cst_24 = arith.constant 1.000000e+00 : f32
    %35 = vector.broadcast %cst_24 : f32 to vector<2x32xf32>
    %36 = arith.addf %35, %34 : vector<2x32xf32>
    %37 = arith.divf %35, %36 : vector<2x32xf32>
    %38 = vector.extract_strided_slice %25 {offsets = [0, 64], sizes = [2, 32], strides = [1, 1]} : vector<2x128xf32> to vector<2x32xf32>
    %39 = math.tanh %38 : vector<2x32xf32>
    %40 = vector.extract_strided_slice %25 {offsets = [0, 96], sizes = [2, 32], strides = [1, 1]} : vector<2x128xf32> to vector<2x32xf32>
    %41 = arith.negf %40 : vector<2x32xf32>
    %42 = math.exp %41 : vector<2x32xf32>
    %cst_25 = arith.constant 1.000000e+00 : f32
    %43 = vector.broadcast %cst_25 : f32 to vector<2x32xf32>
    %44 = arith.addf %43, %42 : vector<2x32xf32>
    %45 = arith.divf %43, %44 : vector<2x32xf32>
    %46 = arith.mulf %37, %20 : vector<2x32xf32>
    %47 = arith.mulf %31, %39 : vector<2x32xf32>
    %48 = arith.addf %46, %47 : vector<2x32xf32>
    %49 = math.tanh %48 : vector<2x32xf32>
    %50 = arith.mulf %45, %49 : vector<2x32xf32>
    %51 = vector.shape_cast %50 : vector<2x32xf32> to vector<2x1x32xf32>
    %c0_26 = arith.constant 0 : index
    %c0_27 = arith.constant 0 : index
    %c0_28 = arith.constant 0 : index
    %52 = vector.load %arg11[%c0_26, %c0_27, %c0_28] : memref<2x8x32xf32, #tpu.memory_space<vmem>>, vector<2x1x32xf32>
    tpu.vector_store %arg11[%c0_26, %c0_27, %c0_28], %51 {strides = array<i32>} : memref<2x8x32xf32, #tpu.memory_space<vmem>>, vector<2x1x32xf32>,
    %c0_29 = arith.constant 0 : index
    %c1 = arith.constant 1 : index
    %c0_30 = arith.constant 0 : index
    %53 = vector.load %arg10[%c0_29, %c1, %c0_30] : memref<2x8x128xf32, #tpu.memory_space<vmem>>, vector<2x1x128xf32>
    %54 = vector.shape_cast %53 : vector<2x1x128xf32> to vector<2x128xf32>
    %55 = arith.truncf %50 : vector<2x32xf32> to vector<2x32xbf16>
    %cst_31 = arith.constant dense<0.000000e+00> : vector<2x128xf32>
    %56 = tpu.matmul %55, %18, %cst_31 {dimension_numbers = #tpu.dot_dimension_numbers<[1], [0], [0], [1], [0, 0, 1, 1], [], []>} : vector<2x32xbf16>, vector<32x128xbf16>, vector<2x128xf32> -> vector<2x128xf32>
    %57 = arith.addf %54, %56 : vector<2x128xf32>
    %58 = vector.extract_strided_slice %57 {offsets = [0, 0], sizes = [2, 32], strides = [1, 1]} : vector<2x128xf32> to vector<2x32xf32>
    %59 = arith.negf %58 : vector<2x32xf32>
    %60 = math.exp %59 : vector<2x32xf32>
    %cst_32 = arith.constant 1.000000e+00 : f32
    %61 = vector.broadcast %cst_32 : f32 to vector<2x32xf32>
    %62 = arith.addf %61, %60 : vector<2x32xf32>
    %63 = arith.divf %61, %62 : vector<2x32xf32>
    %64 = vector.extract_strided_slice %57 {offsets = [0, 32], sizes = [2, 32], strides = [1, 1]} : vector<2x128xf32> to vector<2x32xf32>
    %65 = arith.negf %64 : vector<2x32xf32>
    %66 = math.exp %65 : vector<2x32xf32>
    %cst_33 = arith.constant 1.000000e+00 : f32
    %67 = vector.broadcast %cst_33 : f32 to vector<2x32xf32>
    %68 = arith.addf %67, %66 : vector<2x32xf32>
    %69 = arith.divf %67, %68 : vector<2x32xf32>
    %70 = vector.extract_strided_slice %57 {offsets = [0, 64], sizes = [2, 32], strides = [1, 1]} : vector<2x128xf32> to vector<2x32xf32>
    %71 = math.tanh %70 : vector<2x32xf32>
    %72 = vector.extract_strided_slice %57 {offsets = [0, 96], sizes = [2, 32], strides = [1, 1]} : vector<2x128xf32> to vector<2x32xf32>
    %73 = arith.negf %72 : vector<2x32xf32>
    %74 = math.exp %73 : vector<2x32xf32>
    %cst_34 = arith.constant 1.000000e+00 : f32
    %75 = vector.broadcast %cst_34 : f32 to vector<2x32xf32>
    %76 = arith.addf %75, %74 : vector<2x32xf32>
    %77 = arith.divf %75, %76 : vector<2x32xf32>
    %78 = arith.mulf %69, %48 : vector<2x32xf32>
    %79 = arith.mulf %63, %71 : vector<2x32xf32>
    %80 = arith.addf %78, %79 : vector<2x32xf32>
    %81 = math.tanh %80 : vector<2x32xf32>
    %82 = arith.mulf %77, %81 : vector<2x32xf32>
    %83 = vector.shape_cast %82 : vector<2x32xf32> to vector<2x1x32xf32>
    %c0_35 = arith.constant 0 : index
    %c1_36 = arith.constant 1 : index
    %c0_37 = arith.constant 0 : index
    %84 = vector.load %arg11[%c0_35, %c1_36, %c0_37] : memref<2x8x32xf32, #tpu.memory_space<vmem>>, vector<2x1x32xf32>
    tpu.vector_store %arg11[%c0_35, %c1_36, %c0_37], %83 {strides = array<i32>} : memref<2x8x32xf32, #tpu.memory_space<vmem>>, vector<2x1x32xf32>,
    %c0_38 = arith.constant 0 : index
    %c2 = arith.constant 2 : index
    %c0_39 = arith.constant 0 : index
    %85 = vector.load %arg10[%c0_38, %c2, %c0_39] : memref<2x8x128xf32, #tpu.memory_space<vmem>>, vector<2x1x128xf32>
    %86 = vector.shape_cast %85 : vector<2x1x128xf32> to vector<2x128xf32>
    %87 = arith.truncf %82 : vector<2x32xf32> to vector<2x32xbf16>
    %cst_40 = arith.constant dense<0.000000e+00> : vector<2x128xf32>
    %88 = tpu.matmul %87, %18, %cst_40 {dimension_numbers = #tpu.dot_dimension_numbers<[1], [0], [0], [1], [0, 0, 1, 1], [], []>} : vector<2x32xbf16>, vector<32x128xbf16>, vector<2x128xf32> -> vector<2x128xf32>
    %89 = arith.addf %86, %88 : vector<2x128xf32>
    %90 = vector.extract_strided_slice %89 {offsets = [0, 0], sizes = [2, 32], strides = [1, 1]} : vector<2x128xf32> to vector<2x32xf32>
    %91 = arith.negf %90 : vector<2x32xf32>
    %92 = math.exp %91 : vector<2x32xf32>
    %cst_41 = arith.constant 1.000000e+00 : f32
    %93 = vector.broadcast %cst_41 : f32 to vector<2x32xf32>
    %94 = arith.addf %93, %92 : vector<2x32xf32>
    %95 = arith.divf %93, %94 : vector<2x32xf32>
    %96 = vector.extract_strided_slice %89 {offsets = [0, 32], sizes = [2, 32], strides = [1, 1]} : vector<2x128xf32> to vector<2x32xf32>
    %97 = arith.negf %96 : vector<2x32xf32>
    %98 = math.exp %97 : vector<2x32xf32>
    %cst_42 = arith.constant 1.000000e+00 : f32
    %99 = vector.broadcast %cst_42 : f32 to vector<2x32xf32>
    %100 = arith.addf %99, %98 : vector<2x32xf32>
    %101 = arith.divf %99, %100 : vector<2x32xf32>
    %102 = vector.extract_strided_slice %89 {offsets = [0, 64], sizes = [2, 32], strides = [1, 1]} : vector<2x128xf32> to vector<2x32xf32>
    %103 = math.tanh %102 : vector<2x32xf32>
    %104 = vector.extract_strided_slice %89 {offsets = [0, 96], sizes = [2, 32], strides = [1, 1]} : vector<2x128xf32> to vector<2x32xf32>
    %105 = arith.negf %104 : vector<2x32xf32>
    %106 = math.exp %105 : vector<2x32xf32>
    %cst_43 = arith.constant 1.000000e+00 : f32
    %107 = vector.broadcast %cst_43 : f32 to vector<2x32xf32>
    %108 = arith.addf %107, %106 : vector<2x32xf32>
    %109 = arith.divf %107, %108 : vector<2x32xf32>
    %110 = arith.mulf %101, %80 : vector<2x32xf32>
    %111 = arith.mulf %95, %103 : vector<2x32xf32>
    %112 = arith.addf %110, %111 : vector<2x32xf32>
    %113 = math.tanh %112 : vector<2x32xf32>
    %114 = arith.mulf %109, %113 : vector<2x32xf32>
    %115 = vector.shape_cast %114 : vector<2x32xf32> to vector<2x1x32xf32>
    %c0_44 = arith.constant 0 : index
    %c2_45 = arith.constant 2 : index
    %c0_46 = arith.constant 0 : index
    %116 = vector.load %arg11[%c0_44, %c2_45, %c0_46] : memref<2x8x32xf32, #tpu.memory_space<vmem>>, vector<2x1x32xf32>
    tpu.vector_store %arg11[%c0_44, %c2_45, %c0_46], %115 {strides = array<i32>} : memref<2x8x32xf32, #tpu.memory_space<vmem>>, vector<2x1x32xf32>,
    %c0_47 = arith.constant 0 : index
    %c3 = arith.constant 3 : index
    %c0_48 = arith.constant 0 : index
    %117 = vector.load %arg10[%c0_47, %c3, %c0_48] : memref<2x8x128xf32, #tpu.memory_space<vmem>>, vector<2x1x128xf32>
    %118 = vector.shape_cast %117 : vector<2x1x128xf32> to vector<2x128xf32>
    %119 = arith.truncf %114 : vector<2x32xf32> to vector<2x32xbf16>
    %cst_49 = arith.constant dense<0.000000e+00> : vector<2x128xf32>
    %120 = tpu.matmul %119, %18, %cst_49 {dimension_numbers = #tpu.dot_dimension_numbers<[1], [0], [0], [1], [0, 0, 1, 1], [], []>} : vector<2x32xbf16>, vector<32x128xbf16>, vector<2x128xf32> -> vector<2x128xf32>
    %121 = arith.addf %118, %120 : vector<2x128xf32>
    %122 = vector.extract_strided_slice %121 {offsets = [0, 0], sizes = [2, 32], strides = [1, 1]} : vector<2x128xf32> to vector<2x32xf32>
    %123 = arith.negf %122 : vector<2x32xf32>
    %124 = math.exp %123 : vector<2x32xf32>
    %cst_50 = arith.constant 1.000000e+00 : f32
    %125 = vector.broadcast %cst_50 : f32 to vector<2x32xf32>
    %126 = arith.addf %125, %124 : vector<2x32xf32>
    %127 = arith.divf %125, %126 : vector<2x32xf32>
    %128 = vector.extract_strided_slice %121 {offsets = [0, 32], sizes = [2, 32], strides = [1, 1]} : vector<2x128xf32> to vector<2x32xf32>
    %129 = arith.negf %128 : vector<2x32xf32>
    %130 = math.exp %129 : vector<2x32xf32>
    %cst_51 = arith.constant 1.000000e+00 : f32
    %131 = vector.broadcast %cst_51 : f32 to vector<2x32xf32>
    %132 = arith.addf %131, %130 : vector<2x32xf32>
    %133 = arith.divf %131, %132 : vector<2x32xf32>
    %134 = vector.extract_strided_slice %121 {offsets = [0, 64], sizes = [2, 32], strides = [1, 1]} : vector<2x128xf32> to vector<2x32xf32>
    %135 = math.tanh %134 : vector<2x32xf32>
    %136 = vector.extract_strided_slice %121 {offsets = [0, 96], sizes = [2, 32], strides = [1, 1]} : vector<2x128xf32> to vector<2x32xf32>
    %137 = arith.negf %136 : vector<2x32xf32>
    %138 = math.exp %137 : vector<2x32xf32>
    %cst_52 = arith.constant 1.000000e+00 : f32
    %139 = vector.broadcast %cst_52 : f32 to vector<2x32xf32>
    %140 = arith.addf %139, %138 : vector<2x32xf32>
    %141 = arith.divf %139, %140 : vector<2x32xf32>
    %142 = arith.mulf %133, %112 : vector<2x32xf32>
    %143 = arith.mulf %127, %135 : vector<2x32xf32>
    %144 = arith.addf %142, %143 : vector<2x32xf32>
    %145 = math.tanh %144 : vector<2x32xf32>
    %146 = arith.mulf %141, %145 : vector<2x32xf32>
    %147 = vector.shape_cast %146 : vector<2x32xf32> to vector<2x1x32xf32>
    %c0_53 = arith.constant 0 : index
    %c3_54 = arith.constant 3 : index
    %c0_55 = arith.constant 0 : index
    %148 = vector.load %arg11[%c0_53, %c3_54, %c0_55] : memref<2x8x32xf32, #tpu.memory_space<vmem>>, vector<2x1x32xf32>
    tpu.vector_store %arg11[%c0_53, %c3_54, %c0_55], %147 {strides = array<i32>} : memref<2x8x32xf32, #tpu.memory_space<vmem>>, vector<2x1x32xf32>,
    %c0_56 = arith.constant 0 : index
    %c4 = arith.constant 4 : index
    %c0_57 = arith.constant 0 : index
    %149 = vector.load %arg10[%c0_56, %c4, %c0_57] : memref<2x8x128xf32, #tpu.memory_space<vmem>>, vector<2x1x128xf32>
    %150 = vector.shape_cast %149 : vector<2x1x128xf32> to vector<2x128xf32>
    %151 = arith.truncf %146 : vector<2x32xf32> to vector<2x32xbf16>
    %cst_58 = arith.constant dense<0.000000e+00> : vector<2x128xf32>
    %152 = tpu.matmul %151, %18, %cst_58 {dimension_numbers = #tpu.dot_dimension_numbers<[1], [0], [0], [1], [0, 0, 1, 1], [], []>} : vector<2x32xbf16>, vector<32x128xbf16>, vector<2x128xf32> -> vector<2x128xf32>
    %153 = arith.addf %150, %152 : vector<2x128xf32>
    %154 = vector.extract_strided_slice %153 {offsets = [0, 0], sizes = [2, 32], strides = [1, 1]} : vector<2x128xf32> to vector<2x32xf32>
    %155 = arith.negf %154 : vector<2x32xf32>
    %156 = math.exp %155 : vector<2x32xf32>
    %cst_59 = arith.constant 1.000000e+00 : f32
    %157 = vector.broadcast %cst_59 : f32 to vector<2x32xf32>
    %158 = arith.addf %157, %156 : vector<2x32xf32>
    %159 = arith.divf %157, %158 : vector<2x32xf32>
    %160 = vector.extract_strided_slice %153 {offsets = [0, 32], sizes = [2, 32], strides = [1, 1]} : vector<2x128xf32> to vector<2x32xf32>
    %161 = arith.negf %160 : vector<2x32xf32>
    %162 = math.exp %161 : vector<2x32xf32>
    %cst_60 = arith.constant 1.000000e+00 : f32
    %163 = vector.broadcast %cst_60 : f32 to vector<2x32xf32>
    %164 = arith.addf %163, %162 : vector<2x32xf32>
    %165 = arith.divf %163, %164 : vector<2x32xf32>
    %166 = vector.extract_strided_slice %153 {offsets = [0, 64], sizes = [2, 32], strides = [1, 1]} : vector<2x128xf32> to vector<2x32xf32>
    %167 = math.tanh %166 : vector<2x32xf32>
    %168 = vector.extract_strided_slice %153 {offsets = [0, 96], sizes = [2, 32], strides = [1, 1]} : vector<2x128xf32> to vector<2x32xf32>
    %169 = arith.negf %168 : vector<2x32xf32>
    %170 = math.exp %169 : vector<2x32xf32>
    %cst_61 = arith.constant 1.000000e+00 : f32
    %171 = vector.broadcast %cst_61 : f32 to vector<2x32xf32>
    %172 = arith.addf %171, %170 : vector<2x32xf32>
    %173 = arith.divf %171, %172 : vector<2x32xf32>
    %174 = arith.mulf %165, %144 : vector<2x32xf32>
    %175 = arith.mulf %159, %167 : vector<2x32xf32>
    %176 = arith.addf %174, %175 : vector<2x32xf32>
    %177 = math.tanh %176 : vector<2x32xf32>
    %178 = arith.mulf %173, %177 : vector<2x32xf32>
    %179 = vector.shape_cast %178 : vector<2x32xf32> to vector<2x1x32xf32>
    %c0_62 = arith.constant 0 : index
    %c4_63 = arith.constant 4 : index
    %c0_64 = arith.constant 0 : index
    %180 = vector.load %arg11[%c0_62, %c4_63, %c0_64] : memref<2x8x32xf32, #tpu.memory_space<vmem>>, vector<2x1x32xf32>
    tpu.vector_store %arg11[%c0_62, %c4_63, %c0_64], %179 {strides = array<i32>} : memref<2x8x32xf32, #tpu.memory_space<vmem>>, vector<2x1x32xf32>,
    %c0_65 = arith.constant 0 : index
    %c5 = arith.constant 5 : index
    %c0_66 = arith.constant 0 : index
    %181 = vector.load %arg10[%c0_65, %c5, %c0_66] : memref<2x8x128xf32, #tpu.memory_space<vmem>>, vector<2x1x128xf32>
    %182 = vector.shape_cast %181 : vector<2x1x128xf32> to vector<2x128xf32>
    %183 = arith.truncf %178 : vector<2x32xf32> to vector<2x32xbf16>
    %cst_67 = arith.constant dense<0.000000e+00> : vector<2x128xf32>
    %184 = tpu.matmul %183, %18, %cst_67 {dimension_numbers = #tpu.dot_dimension_numbers<[1], [0], [0], [1], [0, 0, 1, 1], [], []>} : vector<2x32xbf16>, vector<32x128xbf16>, vector<2x128xf32> -> vector<2x128xf32>
    %185 = arith.addf %182, %184 : vector<2x128xf32>
    %186 = vector.extract_strided_slice %185 {offsets = [0, 0], sizes = [2, 32], strides = [1, 1]} : vector<2x128xf32> to vector<2x32xf32>
    %187 = arith.negf %186 : vector<2x32xf32>
    %188 = math.exp %187 : vector<2x32xf32>
    %cst_68 = arith.constant 1.000000e+00 : f32
    %189 = vector.broadcast %cst_68 : f32 to vector<2x32xf32>
    %190 = arith.addf %189, %188 : vector<2x32xf32>
    %191 = arith.divf %189, %190 : vector<2x32xf32>
    %192 = vector.extract_strided_slice %185 {offsets = [0, 32], sizes = [2, 32], strides = [1, 1]} : vector<2x128xf32> to vector<2x32xf32>
    %193 = arith.negf %192 : vector<2x32xf32>
    %194 = math.exp %193 : vector<2x32xf32>
    %cst_69 = arith.constant 1.000000e+00 : f32
    %195 = vector.broadcast %cst_69 : f32 to vector<2x32xf32>
    %196 = arith.addf %195, %194 : vector<2x32xf32>
    %197 = arith.divf %195, %196 : vector<2x32xf32>
    %198 = vector.extract_strided_slice %185 {offsets = [0, 64], sizes = [2, 32], strides = [1, 1]} : vector<2x128xf32> to vector<2x32xf32>
    %199 = math.tanh %198 : vector<2x32xf32>
    %200 = vector.extract_strided_slice %185 {offsets = [0, 96], sizes = [2, 32], strides = [1, 1]} : vector<2x128xf32> to vector<2x32xf32>
    %201 = arith.negf %200 : vector<2x32xf32>
    %202 = math.exp %201 : vector<2x32xf32>
    %cst_70 = arith.constant 1.000000e+00 : f32
    %203 = vector.broadcast %cst_70 : f32 to vector<2x32xf32>
    %204 = arith.addf %203, %202 : vector<2x32xf32>
    %205 = arith.divf %203, %204 : vector<2x32xf32>
    %206 = arith.mulf %197, %176 : vector<2x32xf32>
    %207 = arith.mulf %191, %199 : vector<2x32xf32>
    %208 = arith.addf %206, %207 : vector<2x32xf32>
    %209 = math.tanh %208 : vector<2x32xf32>
    %210 = arith.mulf %205, %209 : vector<2x32xf32>
    %211 = vector.shape_cast %210 : vector<2x32xf32> to vector<2x1x32xf32>
    %c0_71 = arith.constant 0 : index
    %c5_72 = arith.constant 5 : index
    %c0_73 = arith.constant 0 : index
    %212 = vector.load %arg11[%c0_71, %c5_72, %c0_73] : memref<2x8x32xf32, #tpu.memory_space<vmem>>, vector<2x1x32xf32>
    tpu.vector_store %arg11[%c0_71, %c5_72, %c0_73], %211 {strides = array<i32>} : memref<2x8x32xf32, #tpu.memory_space<vmem>>, vector<2x1x32xf32>,
    %c0_74 = arith.constant 0 : index
    %c6 = arith.constant 6 : index
    %c0_75 = arith.constant 0 : index
    %213 = vector.load %arg10[%c0_74, %c6, %c0_75] : memref<2x8x128xf32, #tpu.memory_space<vmem>>, vector<2x1x128xf32>
    %214 = vector.shape_cast %213 : vector<2x1x128xf32> to vector<2x128xf32>
    %215 = arith.truncf %210 : vector<2x32xf32> to vector<2x32xbf16>
    %cst_76 = arith.constant dense<0.000000e+00> : vector<2x128xf32>
    %216 = tpu.matmul %215, %18, %cst_76 {dimension_numbers = #tpu.dot_dimension_numbers<[1], [0], [0], [1], [0, 0, 1, 1], [], []>} : vector<2x32xbf16>, vector<32x128xbf16>, vector<2x128xf32> -> vector<2x128xf32>
    %217 = arith.addf %214, %216 : vector<2x128xf32>
    %218 = vector.extract_strided_slice %217 {offsets = [0, 0], sizes = [2, 32], strides = [1, 1]} : vector<2x128xf32> to vector<2x32xf32>
    %219 = arith.negf %218 : vector<2x32xf32>
    %220 = math.exp %219 : vector<2x32xf32>
    %cst_77 = arith.constant 1.000000e+00 : f32
    %221 = vector.broadcast %cst_77 : f32 to vector<2x32xf32>
    %222 = arith.addf %221, %220 : vector<2x32xf32>
    %223 = arith.divf %221, %222 : vector<2x32xf32>
    %224 = vector.extract_strided_slice %217 {offsets = [0, 32], sizes = [2, 32], strides = [1, 1]} : vector<2x128xf32> to vector<2x32xf32>
    %225 = arith.negf %224 : vector<2x32xf32>
    %226 = math.exp %225 : vector<2x32xf32>
    %cst_78 = arith.constant 1.000000e+00 : f32
    %227 = vector.broadcast %cst_78 : f32 to vector<2x32xf32>
    %228 = arith.addf %227, %226 : vector<2x32xf32>
    %229 = arith.divf %227, %228 : vector<2x32xf32>
    %230 = vector.extract_strided_slice %217 {offsets = [0, 64], sizes = [2, 32], strides = [1, 1]} : vector<2x128xf32> to vector<2x32xf32>
    %231 = math.tanh %230 : vector<2x32xf32>
    %232 = vector.extract_strided_slice %217 {offsets = [0, 96], sizes = [2, 32], strides = [1, 1]} : vector<2x128xf32> to vector<2x32xf32>
    %233 = arith.negf %232 : vector<2x32xf32>
    %234 = math.exp %233 : vector<2x32xf32>
    %cst_79 = arith.constant 1.000000e+00 : f32
    %235 = vector.broadcast %cst_79 : f32 to vector<2x32xf32>
    %236 = arith.addf %235, %234 : vector<2x32xf32>
    %237 = arith.divf %235, %236 : vector<2x32xf32>
    %238 = arith.mulf %229, %208 : vector<2x32xf32>
    %239 = arith.mulf %223, %231 : vector<2x32xf32>
    %240 = arith.addf %238, %239 : vector<2x32xf32>
    %241 = math.tanh %240 : vector<2x32xf32>
    %242 = arith.mulf %237, %241 : vector<2x32xf32>
    %243 = vector.shape_cast %242 : vector<2x32xf32> to vector<2x1x32xf32>
    %c0_80 = arith.constant 0 : index
    %c6_81 = arith.constant 6 : index
    %c0_82 = arith.constant 0 : index
    %244 = vector.load %arg11[%c0_80, %c6_81, %c0_82] : memref<2x8x32xf32, #tpu.memory_space<vmem>>, vector<2x1x32xf32>
    tpu.vector_store %arg11[%c0_80, %c6_81, %c0_82], %243 {strides = array<i32>} : memref<2x8x32xf32, #tpu.memory_space<vmem>>, vector<2x1x32xf32>,
    %c0_83 = arith.constant 0 : index
    %c7 = arith.constant 7 : index
    %c0_84 = arith.constant 0 : index
    %245 = vector.load %arg10[%c0_83, %c7, %c0_84] : memref<2x8x128xf32, #tpu.memory_space<vmem>>, vector<2x1x128xf32>
    %246 = vector.shape_cast %245 : vector<2x1x128xf32> to vector<2x128xf32>
    %247 = arith.truncf %242 : vector<2x32xf32> to vector<2x32xbf16>
    %cst_85 = arith.constant dense<0.000000e+00> : vector<2x128xf32>
    %248 = tpu.matmul %247, %18, %cst_85 {dimension_numbers = #tpu.dot_dimension_numbers<[1], [0], [0], [1], [0, 0, 1, 1], [], []>} : vector<2x32xbf16>, vector<32x128xbf16>, vector<2x128xf32> -> vector<2x128xf32>
    %249 = arith.addf %246, %248 : vector<2x128xf32>
    %250 = vector.extract_strided_slice %249 {offsets = [0, 0], sizes = [2, 32], strides = [1, 1]} : vector<2x128xf32> to vector<2x32xf32>
    %251 = arith.negf %250 : vector<2x32xf32>
    %252 = math.exp %251 : vector<2x32xf32>
    %cst_86 = arith.constant 1.000000e+00 : f32
    %253 = vector.broadcast %cst_86 : f32 to vector<2x32xf32>
    %254 = arith.addf %253, %252 : vector<2x32xf32>
    %255 = arith.divf %253, %254 : vector<2x32xf32>
    %256 = vector.extract_strided_slice %249 {offsets = [0, 32], sizes = [2, 32], strides = [1, 1]} : vector<2x128xf32> to vector<2x32xf32>
    %257 = arith.negf %256 : vector<2x32xf32>
    %258 = math.exp %257 : vector<2x32xf32>
    %cst_87 = arith.constant 1.000000e+00 : f32
    %259 = vector.broadcast %cst_87 : f32 to vector<2x32xf32>
    %260 = arith.addf %259, %258 : vector<2x32xf32>
    %261 = arith.divf %259, %260 : vector<2x32xf32>
    %262 = vector.extract_strided_slice %249 {offsets = [0, 64], sizes = [2, 32], strides = [1, 1]} : vector<2x128xf32> to vector<2x32xf32>
    %263 = math.tanh %262 : vector<2x32xf32>
    %264 = vector.extract_strided_slice %249 {offsets = [0, 96], sizes = [2, 32], strides = [1, 1]} : vector<2x128xf32> to vector<2x32xf32>
    %265 = arith.negf %264 : vector<2x32xf32>
    %266 = math.exp %265 : vector<2x32xf32>
    %cst_88 = arith.constant 1.000000e+00 : f32
    %267 = vector.broadcast %cst_88 : f32 to vector<2x32xf32>
    %268 = arith.addf %267, %266 : vector<2x32xf32>
    %269 = arith.divf %267, %268 : vector<2x32xf32>
    %270 = arith.mulf %261, %240 : vector<2x32xf32>
    %271 = arith.mulf %255, %263 : vector<2x32xf32>
    %272 = arith.addf %270, %271 : vector<2x32xf32>
    %273 = math.tanh %272 : vector<2x32xf32>
    %274 = arith.mulf %269, %273 : vector<2x32xf32>
    %275 = vector.shape_cast %274 : vector<2x32xf32> to vector<2x1x32xf32>
    %c0_89 = arith.constant 0 : index
    %c7_90 = arith.constant 7 : index
    %c0_91 = arith.constant 0 : index
    %276 = vector.load %arg11[%c0_89, %c7_90, %c0_91] : memref<2x8x32xf32, #tpu.memory_space<vmem>>, vector<2x1x32xf32>
    tpu.vector_store %arg11[%c0_89, %c7_90, %c0_91], %275 {strides = array<i32>} : memref<2x8x32xf32, #tpu.memory_space<vmem>>, vector<2x1x32xf32>,
    %c0_92 = arith.constant 0 : index
    %c0_93 = arith.constant 0 : index
    %c0_94 = arith.constant 0 : index
    %277 = vector.load %arg11[%c0_92, %c0_93, %c0_94] : memref<2x8x32xf32, #tpu.memory_space<vmem>>, vector<2x8x32xf32>
    %278 = vector.shape_cast %277 : vector<2x8x32xf32> to vector<16x32xf32>
    %279 = arith.truncf %278 : vector<16x32xf32> to vector<16x32xbf16>
    %c0_95 = arith.constant 0 : index
    %c0_96 = arith.constant 0 : index
    %280 = vector.load %arg7[%c0_95, %c0_96] : memref<32x128xbf16, #tpu.memory_space<vmem>>, vector<32x128xbf16>
    %cst_97 = arith.constant dense<0.000000e+00> : vector<16x128xf32>
    %281 = tpu.matmul %279, %280, %cst_97 {dimension_numbers = #tpu.dot_dimension_numbers<[1], [0], [0], [1], [0, 0, 1, 1], [], []>} : vector<16x32xbf16>, vector<32x128xbf16>, vector<16x128xf32> -> vector<16x128xf32>
    %c0_98 = arith.constant 0 : index
    %c0_99 = arith.constant 0 : index
    %282 = vector.load %arg8[%c0_98, %c0_99] : memref<1x128xf32, #tpu.memory_space<vmem>>, vector<1x128xf32>
    %283 = vector.broadcast %282 : vector<1x128xf32> to vector<16x128xf32>
    %284 = arith.addf %281, %283 : vector<16x128xf32>
    %285 = arith.negf %284 : vector<16x128xf32>
    %286 = math.exp %285 : vector<16x128xf32>
    %cst_100 = arith.constant 1.000000e+00 : f32
    %287 = vector.broadcast %cst_100 : f32 to vector<16x128xf32>
    %288 = arith.addf %287, %286 : vector<16x128xf32>
    %289 = arith.divf %287, %288 : vector<16x128xf32>
    %290 = vector.shape_cast %289 : vector<16x128xf32> to vector<2x8x128xf32>
    %c0_101 = arith.constant 0 : index
    %c0_102 = arith.constant 0 : index
    %c0_103 = arith.constant 0 : index
    %291 = vector.load %arg9[%c0_101, %c0_102, %c0_103] : memref<2x8x128xf32, #tpu.memory_space<vmem>>, vector<2x8x128xf32>
    tpu.vector_store %arg9[%c0_101, %c0_102, %c0_103], %290 {strides = array<i32>} : memref<2x8x128xf32, #tpu.memory_space<vmem>>, vector<2x8x128xf32>,
    return
  }
  func.func @transform_0(%arg0: i32) -> (i32, i32, i32) {
    %c0_i32 = arith.constant 0 : i32
    %c0_i32_0 = arith.constant 0 : i32
    %c0_i32_1 = arith.constant 0 : i32
    return %arg0, %c0_i32, %c0_i32_0 : i32, i32, i32
  }
  func.func @transform_1(%arg0: i32) -> (i32, i32, i32) {
    %c0_i32 = arith.constant 0 : i32
    %c0_i32_0 = arith.constant 0 : i32
    %c0_i32_1 = arith.constant 0 : i32
    return %arg0, %c0_i32, %c0_i32_0 : i32, i32, i32
  }
  func.func @transform_2(%arg0: i32) -> (i32, i32) {
    %c0_i32 = arith.constant 0 : i32
    %c0_i32_0 = arith.constant 0 : i32
    %c0_i32_1 = arith.constant 0 : i32
    return %c0_i32, %c0_i32_0 : i32, i32
  }
  func.func @transform_3(%arg0: i32) -> (i32, i32) {
    %c0_i32 = arith.constant 0 : i32
    %c0_i32_0 = arith.constant 0 : i32
    %c0_i32_1 = arith.constant 0 : i32
    return %c0_i32, %c0_i32_0 : i32, i32
  }
  func.func @transform_4(%arg0: i32) -> (i32, i32) {
    %c0_i32 = arith.constant 0 : i32
    %c0_i32_0 = arith.constant 0 : i32
    %c0_i32_1 = arith.constant 0 : i32
    return %c0_i32, %c0_i32_0 : i32, i32
  }
  func.func @transform_5(%arg0: i32) -> (i32, i32) {
    %c0_i32 = arith.constant 0 : i32
    %c0_i32_0 = arith.constant 0 : i32
    %c0_i32_1 = arith.constant 0 : i32
    return %c0_i32, %c0_i32_0 : i32, i32
  }
  func.func @transform_6(%arg0: i32) -> (i32, i32) {
    %c0_i32 = arith.constant 0 : i32
    %c0_i32_0 = arith.constant 0 : i32
    %c0_i32_1 = arith.constant 0 : i32
    return %c0_i32, %c0_i32_0 : i32, i32
  }
  func.func @transform_7(%arg0: i32) -> (i32, i32) {
    %c0_i32 = arith.constant 0 : i32
    %c0_i32_0 = arith.constant 0 : i32
    %c0_i32_1 = arith.constant 0 : i32
    return %c0_i32, %c0_i32_0 : i32, i32
  }
  func.func @transform_8(%arg0: i32) -> (i32, i32, i32) {
    %c0_i32 = arith.constant 0 : i32
    %c0_i32_0 = arith.constant 0 : i32
    %c0_i32_1 = arith.constant 0 : i32
    return %arg0, %c0_i32, %c0_i32_0 : i32, i32, i32
  }
}

</mosaic_0001>

<llo_original>
// kernel: embedding_dkt_forward.1
$region0: #{embedding_dkt_forward.1}
  #allocation0 [shape = 'u32[]', space=smem, size = 0x4, offset = 0x4, fixed_abs, tag = 'smem constant byte address 0x4 - core index']
  #allocation1 [shape = 'u32[144,128]{1,0:T(1,128)}', space=vmem, size = 0x12000, scoped, tag = 'internal scratch']
  #allocation2 [shape = 'f32[2,8,128]{2,1,0:T(8,128)}', space=vmem, size = 0x2000, scoped, tag = 'scratch operand']
  #allocation3 [shape = 'f32[2,8,32]{2,1,0:T(8,128)}', space=vmem, size = 0x2000, scoped, tag = 'scratch operand']
  %s0 = inlined_call_operand.vmem [shape: f32[2,8,16], index: 0, kind: input, shape index: {}]
  %s1 = inlined_call_operand.vmem [shape: f32[2,8,1], index: 1, kind: input, shape index: {}]
  %s2 = inlined_call_operand.vmem [shape: bf16[16,128], index: 2, kind: input, shape index: {}]
  %s3 = inlined_call_operand.vmem [shape: bf16[16,128], index: 3, kind: input, shape index: {}]
  %s4 = inlined_call_operand.vmem [shape: bf16[32,128], index: 4, kind: input, shape index: {}]
  %s5 = inlined_call_operand.vmem [shape: f32[1,128], index: 5, kind: input, shape index: {}]
  %s6 = inlined_call_operand.vmem [shape: bf16[32,128], index: 6, kind: input, shape index: {}]
  %s7 = inlined_call_operand.vmem [shape: f32[1,128], index: 7, kind: input, shape index: {}]
  %s8 = inlined_call_operand.hbm [shape: f32[2,8,128], index: 8, kind: output, shape index: {}]
  %s9 = sld [smem:[#allocation0]]
  $region42: #{embedding_dkt_forward.1} parent=0
    _
  %s11 = ssub.s32 1, %s9
  %s12 = scalar_select 0, %s11, %s9
  $region1: #{embedding_dkt_forward.1} parent=0
    #allocation4 [shape = 'u8[8192]{0}', space=vmem, size = 0x2000, scoped, tag = 'output window, operand 0, single buffered']
    #allocation5 [shape = 's32[1]{0}', space=sflag, size = 0x4, scoped, tag = 'scoped memory for embedding_dkt_forward.1']
    %13 = vsyncpa [#allocation5], 0
    // Predicated region
    $region2: #{embedding_dkt_forward.1} parent=1 // pred_check
      _
    $region3: #{embedding_dkt_forward.1} parent=1 // pred_check_branch
      %15 = sbr.rel (0) target = $region5
    $region4: #{embedding_dkt_forward.1} parent=1 // pred_region
      _
    $region5: #{embedding_dkt_forward.1} parent=1 // pred_fallthru
      _
    // Predicated region
    $region6: #{embedding_dkt_forward.1} parent=1 // pred_check
      _
    $region7: #{embedding_dkt_forward.1} parent=1 // pred_check_branch
      %17 = sbr.rel (0) target = $region9
    $region8: #{embedding_dkt_forward.1} parent=1 // pred_region
      _
    $region9: #{embedding_dkt_forward.1} parent=1 // pred_fallthru
      _
    // Predicated region
    $region10: #{embedding_dkt_forward.1} parent=1 // pred_check
      _
    $region11: #{embedding_dkt_forward.1} parent=1 // pred_check_branch
      %19 = sbr.rel (0) target = $region13
    $region12: #{embedding_dkt_forward.1} parent=1 // pred_region
      _
    $region13: #{embedding_dkt_forward.1} parent=1 // pred_fallthru
      _
    // Predicated region
    $region14: #{embedding_dkt_forward.1} parent=1 // pred_check
      _
    $region15: #{embedding_dkt_forward.1} parent=1 // pred_check_branch
      %21 = sbr.rel (0) target = $region17
    $region16: #{embedding_dkt_forward.1} parent=1 // pred_region
      _
    $region17: #{embedding_dkt_forward.1} parent=1 // pred_fallthru
      _
    // Predicated region
    $region18: #{embedding_dkt_forward.1} parent=1 // pred_check
      _
    $region19: #{embedding_dkt_forward.1} parent=1 // pred_check_branch
      %23 = sbr.rel (0) target = $region21
    $region20: #{embedding_dkt_forward.1} parent=1 // pred_region
      _
    $region21: #{embedding_dkt_forward.1} parent=1 // pred_fallthru
      _
    // Predicated region
    $region22: #{embedding_dkt_forward.1} parent=1 // pred_check
      _
    $region23: #{embedding_dkt_forward.1} parent=1 // pred_check_branch
      %25 = sbr.rel (0) target = $region25
    $region24: #{embedding_dkt_forward.1} parent=1 // pred_region
      _
    $region25: #{embedding_dkt_forward.1} parent=1 // pred_fallthru
      _
    // Predicated region
    $region26: #{embedding_dkt_forward.1} parent=1 // pred_check
      _
    $region27: #{embedding_dkt_forward.1} parent=1 // pred_check_branch
      %27 = sbr.rel (0) target = $region29
    $region28: #{embedding_dkt_forward.1} parent=1 // pred_region
      _
    $region29: #{embedding_dkt_forward.1} parent=1 // pred_fallthru
      _
    // Predicated region
    $region30: #{embedding_dkt_forward.1} parent=1 // pred_check
      _
    $region31: #{embedding_dkt_forward.1} parent=1 // pred_check_branch
      %29 = sbr.rel (0) target = $region33
    $region32: #{embedding_dkt_forward.1} parent=1 // pred_region
      _
    $region33: #{embedding_dkt_forward.1} parent=1 // pred_fallthru
      _
    %v31 = vld [vmem:[%s0] sm:$0xff]
    %v32 = vld [vmem:[%s0 + $0x8] sm:$0xff]
    %v33 = vld [vmem:[%s1] sm:$0xff]
    %v34 = vld [vmem:[%s1 + $0x8] sm:$0xff]
    %v35 = vpack.c.bf16 %v32, %v31
    %37 = vset.pattern.permute.xlu0 0
    %38 = vperm.xlu0 %37, %v33
    %v39 = vpop.permute.xlu0 %38
    %42 = vset.pattern.permute.xlu0 0
    %43 = vperm.xlu0 %42, %v34
    %v44 = vpop.permute.xlu0 %43
    %v46 = vmul.f32 %v31, %v39
    %v47 = vmul.f32 %v32, %v44
    %v48 = vpack.c.bf16 %v47, %v46
    %v49 = vld [vmem:[%s2] sm:$0xf]
    %v50 = vld [vmem:[%s2 + $0x4] sm:$0xf]
    %v51 = vld [vmem:[%s3] sm:$0xf]
    %v52 = vld [vmem:[%s3 + $0x4] sm:$0xf]
    %v55 = vunpack.c.l.b16 %v51
    %v56 = vunpack.c.l.b16 %v52
    %v57 = vpack.c.b16 %v56, %v55
    %vm59 = vcmask 130048
    %v61 = vsel %vm59, %v48, 0
    %63 = vmatprep.subr.bf16.mxu0 0
    %64 = vmatpush1.bf16.msra.mxu0 0
    %65 = vmatprep.subr.bf16.mxu0 0
    %66 = vmatpush1.bf16.msra.mxu0 0
    %67 = vmatprep.subr.bf16.mxu0 0
    %68 = vmatpush1.bf16.msra.mxu0 0
    %69 = vmatprep.subr.bf16.mxu0 0
    %70 = vmatpush1.bf16.msra.mxu0 0
    %71 = vmatprep.subr.bf16.mxu0 0
    %72 = vmatpush1.bf16.msra.mxu0 0
    %73 = vmatprep.subr.bf16.mxu0 0
    %74 = vmatpush1.bf16.msra.mxu0 0
    %75 = vmatprep.subr.bf16.mxu0 0
    %76 = vmatpush1.bf16.msra.mxu0 0
    %77 = vmatprep.subr.bf16.mxu0 0
    %78 = vmatpush1.bf16.msra.mxu0 %v57
    %79 = vmatprep.subr.bf16.mxu0 0
    %80 = vmatpush2.bf16.msra.mxu0 0
    %81 = vmatprep.subr.bf16.mxu0 0
    %82 = vmatpush2.bf16.msra.mxu0 0
    %83 = vmatprep.subr.bf16.mxu0 0
    %84 = vmatpush2.bf16.msra.mxu0 0
    %85 = vmatprep.subr.bf16.mxu0 0
    %86 = vmatpush2.bf16.msra.mxu0 0
    %87 = vmatprep.subr.bf16.mxu0 0
    %88 = vmatpush2.bf16.msra.mxu0 0
    %89 = vmatprep.subr.bf16.mxu0 0
    %90 = vmatpush2.bf16.msra.mxu0 0
    %91 = vmatprep.subr.bf16.mxu0 0
    %92 = vmatpush2.bf16.msra.mxu0 0
    %93 = vmatprep.subr.bf16.mxu0 0
    %94 = vmatpush2.bf16.msra.mxu0 0
    %95 = vmatprep.mubr.bf16.mxu0 0
    %96 = vmatmul.mubr.bf16.gmra.mxu0 %v61
    %v97 = vpop.f32.mrf.mxu0
    %v98 = vadd.f32 0.0, %v97
    %v99 = vpop.f32.mrf.mxu0
    %v100 = vpop.f32.mrf.mxu0
    %v101 = vadd.f32 0.0, %v100
    %v102 = vpop.f32.mrf.mxu0
    %103 = vdwg.mxu0
    %v106 = vunpack.c.l.b16 %v49
    %v107 = vunpack.c.l.b16 %v50
    %v108 = vpack.c.b16 %v107, %v106
    %v111 = vsel %vm59, %v35, 0
    %113 = vmatprep.subr.bf16.mxu0 0
    %114 = vmatpush1.bf16.msra.mxu0 0
    %115 = vmatprep.subr.bf16.mxu0 0
    %116 = vmatpush1.bf16.msra.mxu0 0
    %117 = vmatprep.subr.bf16.mxu0 0
    %118 = vmatpush1.bf16.msra.mxu0 0
    %119 = vmatprep.subr.bf16.mxu0 0
    %120 = vmatpush1.bf16.msra.mxu0 0
    %121 = vmatprep.subr.bf16.mxu0 0
    %122 = vmatpush1.bf16.msra.mxu0 0
    %123 = vmatprep.subr.bf16.mxu0 0
    %124 = vmatpush1.bf16.msra.mxu0 0
    %125 = vmatprep.subr.bf16.mxu0 0
    %126 = vmatpush1.bf16.msra.mxu0 0
    %127 = vmatprep.subr.bf16.mxu0 0
    %128 = vmatpush1.bf16.msra.mxu0 %v108
    %129 = vmatprep.subr.bf16.mxu0 0
    %130 = vmatpush2.bf16.msra.mxu0 0
    %131 = vmatprep.subr.bf16.mxu0 0
    %132 = vmatpush2.bf16.msra.mxu0 0
    %133 = vmatprep.subr.bf16.mxu0 0
    %134 = vmatpush2.bf16.msra.mxu0 0
    %135 = vmatprep.subr.bf16.mxu0 0
    %136 = vmatpush2.bf16.msra.mxu0 0
    %137 = vmatprep.subr.bf16.mxu0 0
    %138 = vmatpush2.bf16.msra.mxu0 0
    %139 = vmatprep.subr.bf16.mxu0 0
    %140 = vmatpush2.bf16.msra.mxu0 0
    %141 = vmatprep.subr.bf16.mxu0 0
    %142 = vmatpush2.bf16.msra.mxu0 0
    %143 = vmatprep.subr.bf16.mxu0 0
    %144 = vmatpush2.bf16.msra.mxu0 0
    %145 = vmatprep.mubr.bf16.mxu0 0
    %146 = vmatmul.mubr.bf16.gmra.mxu0 %v111
    %v147 = vpop.f32.mrf.mxu0
    %v148 = vadd.f32 %v98, %v147
    %v149 = vpop.f32.mrf.mxu0
    %v150 = vpop.f32.mrf.mxu0
    %v151 = vadd.f32 %v101, %v150
    %v152 = vpop.f32.mrf.mxu0
    %153 = vdwg.mxu0
    %v154 = vld [vmem:[%s5] sm:$0x1]
    %v156 = vlaneseq
    %v157 = vshrl.u32 %v156, 7
    %v158 = vsub.s32 0, %v157
    %v159 = vrot.slane %v154, %v158
    %v161 = vadd.f32 %v148, %v159
    %v162 = vadd.f32 %v151, %v159
    %163 = vst [vmem:[#allocation2] sm:$0xff] %v161
    %164 = vst [vmem:[#allocation2 + $0x8] sm:$0xff] %v162
    %v165 = vld [vmem:[%s4] sm:$0xf]
    %v166 = vld [vmem:[%s4 + $0x4] sm:$0xf]
    %v167 = vld [vmem:[%s4 + $0x8] sm:$0xf]
    %v168 = vld [vmem:[%s4 + $0xc] sm:$0xf]
    %v169 = vld [vmem:[#allocation2] sm:$0x1]
    %v170 = vld [vmem:[#allocation2 + $0x8] sm:$0x1]
    %v175 = vunpack.c.l.b16 %v165
    %v176 = vunpack.c.l.b16 %v166
    %v177 = vunpack.c.l.b16 %v167
    %v178 = vunpack.c.l.b16 %v168
    %v179 = vpack.c.b16 %v176, %v175
    %v180 = vpack.c.b16 %v178, %v177
    %vm183 = vcmask 261120
    %v185 = vsel %vm183, 0, 0
    %187 = vmatprep.subr.bf16.mxu0 0
    %188 = vmatpush1.bf16.msra.mxu0 0
    %189 = vmatprep.subr.bf16.mxu0 0
    %190 = vmatpush1.bf16.msra.mxu0 0
    %191 = vmatprep.subr.bf16.mxu0 0
    %192 = vmatpush1.bf16.msra.mxu0 0
    %193 = vmatprep.subr.bf16.mxu0 0
    %194 = vmatpush1.bf16.msra.mxu0 0
    %195 = vmatprep.subr.bf16.mxu0 0
    %196 = vmatpush1.bf16.msra.mxu0 0
    %197 = vmatprep.subr.bf16.mxu0 0
    %198 = vmatpush1.bf16.msra.mxu0 0
    %199 = vmatprep.subr.bf16.mxu0 0
    %200 = vmatpush1.bf16.msra.mxu0 %v180
    %201 = vmatprep.subr.bf16.mxu0 0
    %202 = vmatpush1.bf16.msra.mxu0 %v179
    %203 = vmatprep.subr.bf16.mxu0 0
    %204 = vmatpush2.bf16.msra.mxu0 0
    %205 = vmatprep.subr.bf16.mxu0 0
    %206 = vmatpush2.bf16.msra.mxu0 0
    %207 = vmatprep.subr.bf16.mxu0 0
    %208 = vmatpush2.bf16.msra.mxu0 0
    %209 = vmatprep.subr.bf16.mxu0 0
    %210 = vmatpush2.bf16.msra.mxu0 0
    %211 = vmatprep.subr.bf16.mxu0 0
    %212 = vmatpush2.bf16.msra.mxu0 0
    %213 = vmatprep.subr.bf16.mxu0 0
    %214 = vmatpush2.bf16.msra.mxu0 0
    %215 = vmatprep.subr.bf16.mxu0 0
    %216 = vmatpush2.bf16.msra.mxu0 0
    %217 = vmatprep.subr.bf16.mxu0 0
    %218 = vmatpush2.bf16.msra.mxu0 0
    %219 = vmatprep.mubr.bf16.mxu0 0
    %220 = vmatmul.mubr.bf16.gmra.mxu0 %v185
    %v221 = vpop.f32.mrf.mxu0
    %v222 = vadd.f32 0.0, %v221
    %v223 = vpop.f32.mrf.mxu0
    %v224 = vpop.f32.mrf.mxu0
    %v225 = vpop.f32.mrf.mxu0
    %226 = vdwg.mxu0
    %v228 = vrot.slane %v222, 1
    %v231 = vadd.f32 %v169, %v222
    %v232 = vadd.f32 %v170, %v228
    %v233 = vxor.u32 %v231, 2147483648
    %v234 = vxor.u32 %v232, 2147483648
    %v235 = vmul.f32 %v233, 1.442695
    %v236 = vpow.pop %v235
    %v237 = vmul.f32 %v234, 1.442695
    %v238 = vpow.pop %v237
    %v239 = vadd.f32 %v236, 1.0
    %v240 = vadd.f32 %v238, 1.0
    %v241 = vrcp.pop %v239
    %v242 = vmul.f32 1.0, %v241
    %v243 = vrcp.pop %v240
    %v244 = vmul.f32 1.0, %v243
    %v245 = vtanh.pop %v231
    %v246 = vtanh.pop %v232
    %v247 = vmul.f32 %v242, 0.0
    %v248 = vmul.f32 %v244, 0.0
    %251 = vrot.lane.b32.xlu0 %v245, 64
    %v252 = vpop.permute.xlu0 %251
    %253 = vrot.lane.b32.xlu0 %v246, 64
    %v254 = vpop.permute.xlu0 %253
    %v257 = vmul.f32 %v242, %v252
    %v258 = vmul.f32 %v244, %v254
    %261 = vrot.lane.b32.xlu0 %v257, 32
    %v262 = vpop.permute.xlu0 %261
    %263 = vrot.lane.b32.xlu0 %v258, 32
    %v264 = vpop.permute.xlu0 %263
    %v267 = vadd.f32 %v247, %v262
    %v268 = vadd.f32 %v248, %v264
    %v269 = vtanh.pop %v267
    %v270 = vtanh.pop %v268
    %273 = vrot.lane.b32.xlu0 %v269, 64
    %v274 = vpop.permute.xlu0 %273
    %275 = vrot.lane.b32.xlu0 %v270, 64
    %v276 = vpop.permute.xlu0 %275
    %v279 = vmul.f32 %v242, %v274
    %v280 = vmul.f32 %v244, %v276
    %283 = vrot.lane.b32.xlu0 %v279, 32
    %v284 = vpop.permute.xlu0 %283
    %285 = vrot.lane.b32.xlu0 %v280, 32
    %v286 = vpop.permute.xlu0 %285
    %vm289 = vcmask 253952
    %290 = vst.msk [vmem:[#allocation3] sm:$0x1] %vm289, %v284
    %291 = vst.msk [vmem:[#allocation3 + $0x8] sm:$0x1] %vm289, %v286
    %v292 = vld [vmem:[#allocation2 + $0x1] sm:$0x1]
    %v293 = vld [vmem:[#allocation2 + $0x9] sm:$0x1]
    %v294 = vpack.c.bf16 %v279, %v279
    %v295 = vpack.c.bf16 %v280, %v280
    %v298 = vunpack.c.l.b16 %v294
    %v299 = vunpack.c.l.b16 %v295
    %v300 = vrot.slane %v299, 7
    %vm301 = vcmask 1041409
    %v302 = vsel %vm301, %v300, %v298
    %v303 = vpack.c.b16 %v302, %v302
    %304 = vrot.lane.b32.xlu0 %v303, 32
    %v305 = vpop.permute.xlu0 %304
    %v307 = vsel %vm183, %v305, 0
    %309 = vmatprep.subr.bf16.mxu0 0
    %310 = vmatpush1.bf16.msra.mxu0 0
    %311 = vmatprep.subr.bf16.mxu0 0
    %312 = vmatpush1.bf16.msra.mxu0 0
    %313 = vmatprep.subr.bf16.mxu0 0
    %314 = vmatpush1.bf16.msra.mxu0 0
    %315 = vmatprep.subr.bf16.mxu0 0
    %316 = vmatpush1.bf16.msra.mxu0 0
    %317 = vmatprep.subr.bf16.mxu0 0
    %318 = vmatpush1.bf16.msra.mxu0 0
    %319 = vmatprep.subr.bf16.mxu0 0
    %320 = vmatpush1.bf16.msra.mxu0 0
    %321 = vmatprep.subr.bf16.mxu0 0
    %322 = vmatpush1.bf16.msra.mxu0 %v180
    %323 = vmatprep.subr.bf16.mxu0 0
    %324 = vmatpush1.bf16.msra.mxu0 %v179
    %325 = vmatprep.subr.bf16.mxu0 0
    %326 = vmatpush2.bf16.msra.mxu0 0
    %327 = vmatprep.subr.bf16.mxu0 0
    %328 = vmatpush2.bf16.msra.mxu0 0
    %329 = vmatprep.subr.bf16.mxu0 0
    %330 = vmatpush2.bf16.msra.mxu0 0
    %331 = vmatprep.subr.bf16.mxu0 0
    %332 = vmatpush2.bf16.msra.mxu0 0
    %333 = vmatprep.subr.bf16.mxu0 0
    %334 = vmatpush2.bf16.msra.mxu0 0
    %335 = vmatprep.subr.bf16.mxu0 0
    %336 = vmatpush2.bf16.msra.mxu0 0
    %337 = vmatprep.subr.bf16.mxu0 0
    %338 = vmatpush2.bf16.msra.mxu0 0
    %339 = vmatprep.subr.bf16.mxu0 0
    %340 = vmatpush2.bf16.msra.mxu0 0
    %341 = vmatprep.mubr.bf16.mxu0 0
    %342 = vmatmul.mubr.bf16.gmra.mxu0 %v307
    %v343 = vpop.f32.mrf.mxu0
    %v344 = vadd.f32 0.0, %v343
    %v345 = vpop.f32.mrf.mxu0
    %v346 = vpop.f32.mrf.mxu0
    %v347 = vpop.f32.mrf.mxu0
    %348 = vdwg.mxu0
    %v350 = vrot.slane %v344, 1
    %v353 = vadd.f32 %v292, %v344
    %v354 = vadd.f32 %v293, %v350
    %v355 = vxor.u32 %v353, 2147483648
    %v356 = vxor.u32 %v354, 2147483648
    %v357 = vmul.f32 %v355, 1.442695
    %v358 = vpow.pop %v357
    %v359 = vmul.f32 %v356, 1.442695
    %v360 = vpow.pop %v359
    %v361 = vadd.f32 %v358, 1.0
    %v362 = vadd.f32 %v360, 1.0
    %v363 = vrcp.pop %v361
    %v364 = vmul.f32 1.0, %v363
    %v365 = vrcp.pop %v362
    %v366 = vmul.f32 1.0, %v365
    %v367 = vtanh.pop %v353
    %v368 = vtanh.pop %v354
    %v369 = vmul.f32 %v364, %v267
    %v370 = vmul.f32 %v366, %v268
    %373 = vrot.lane.b32.xlu0 %v367, 64
    %v374 = vpop.permute.xlu0 %373
    %375 = vrot.lane.b32.xlu0 %v368, 64
    %v376 = vpop.permute.xlu0 %375
    %v379 = vmul.f32 %v364, %v374
    %v380 = vmul.f32 %v366, %v376
    %383 = vrot.lane.b32.xlu0 %v379, 32
    %v384 = vpop.permute.xlu0 %383
    %385 = vrot.lane.b32.xlu0 %v380, 32
    %v386 = vpop.permute.xlu0 %385
    %v389 = vadd.f32 %v369, %v384
    %v390 = vadd.f32 %v370, %v386
    %v391 = vtanh.pop %v389
    %v392 = vtanh.pop %v390
    %395 = vrot.lane.b32.xlu0 %v391, 64
    %v396 = vpop.permute.xlu0 %395
    %397 = vrot.lane.b32.xlu0 %v392, 64
    %v398 = vpop.permute.xlu0 %397
    %v401 = vmul.f32 %v364, %v396
    %v402 = vmul.f32 %v366, %v398
    %405 = vrot.lane.b32.xlu0 %v401, 32
    %v406 = vpop.permute.xlu0 %405
    %407 = vrot.lane.b32.xlu0 %v402, 32
    %v408 = vpop.permute.xlu0 %407
    %411 = vst.msk [vmem:[#allocation3 + $0x1] sm:$0x1] %vm289, %v406
    %412 = vst.msk [vmem:[#allocation3 + $0x9] sm:$0x1] %vm289, %v408
    %v413 = vld [vmem:[#allocation2 + $0x2] sm:$0x1]
    %v414 = vld [vmem:[#allocation2 + $0xa] sm:$0x1]
    %v415 = vpack.c.bf16 %v401, %v401
    %v416 = vpack.c.bf16 %v402, %v402
    %v419 = vunpack.c.l.b16 %v415
    %v420 = vunpack.c.l.b16 %v416
    %v421 = vrot.slane %v420, 7
    %v422 = vsel %vm301, %v421, %v419
    %v423 = vpack.c.b16 %v422, %v422
    %424 = vrot.lane.b32.xlu0 %v423, 32
    %v425 = vpop.permute.xlu0 %424
    %v427 = vsel %vm183, %v425, 0
    %429 = vmatprep.subr.bf16.mxu0 0
    %430 = vmatpush1.bf16.msra.mxu0 0
    %431 = vmatprep.subr.bf16.mxu0 0
    %432 = vmatpush1.bf16.msra.mxu0 0
    %433 = vmatprep.subr.bf16.mxu0 0
    %434 = vmatpush1.bf16.msra.mxu0 0
    %435 = vmatprep.subr.bf16.mxu0 0
    %436 = vmatpush1.bf16.msra.mxu0 0
    %437 = vmatprep.subr.bf16.mxu0 0
    %438 = vmatpush1.bf16.msra.mxu0 0
    %439 = vmatprep.subr.bf16.mxu0 0
    %440 = vmatpush1.bf16.msra.mxu0 0
    %441 = vmatprep.subr.bf16.mxu0 0
    %442 = vmatpush1.bf16.msra.mxu0 %v180
    %443 = vmatprep.subr.bf16.mxu0 0
    %444 = vmatpush1.bf16.msra.mxu0 %v179
    %445 = vmatprep.subr.bf16.mxu0 0
    %446 = vmatpush2.bf16.msra.mxu0 0
    %447 = vmatprep.subr.bf16.mxu0 0
    %448 = vmatpush2.bf16.msra.mxu0 0
    %449 = vmatprep.subr.bf16.mxu0 0
    %450 = vmatpush2.bf16.msra.mxu0 0
    %451 = vmatprep.subr.bf16.mxu0 0
    %452 = vmatpush2.bf16.msra.mxu0 0
    %453 = vmatprep.subr.bf16.mxu0 0
    %454 = vmatpush2.bf16.msra.mxu0 0
    %455 = vmatprep.subr.bf16.mxu0 0
    %456 = vmatpush2.bf16.msra.mxu0 0
    %457 = vmatprep.subr.bf16.mxu0 0
    %458 = vmatpush2.bf16.msra.mxu0 0
    %459 = vmatprep.subr.bf16.mxu0 0
    %460 = vmatpush2.bf16.msra.mxu0 0
    %461 = vmatprep.mubr.bf16.mxu0 0
    %462 = vmatmul.mubr.bf16.gmra.mxu0 %v427
    %v463 = vpop.f32.mrf.mxu0
    %v464 = vadd.f32 0.0, %v463
    %v465 = vpop.f32.mrf.mxu0
    %v466 = vpop.f32.mrf.mxu0
    %v467 = vpop.f32.mrf.mxu0
    %468 = vdwg.mxu0
    %v470 = vrot.slane %v464, 1
    %v473 = vadd.f32 %v413, %v464
    %v474 = vadd.f32 %v414, %v470
    %v475 = vxor.u32 %v473, 2147483648
    %v476 = vxor.u32 %v474, 2147483648
    %v477 = vmul.f32 %v475, 1.442695
    %v478 = vpow.pop %v477
    %v479 = vmul.f32 %v476, 1.442695
    %v480 = vpow.pop %v479
    %v481 = vadd.f32 %v478, 1.0
    %v482 = vadd.f32 %v480, 1.0
    %v483 = vrcp.pop %v481
    %v484 = vmul.f32 1.0, %v483
    %v485 = vrcp.pop %v482
    %v486 = vmul.f32 1.0, %v485
    %v487 = vtanh.pop %v473
    %v488 = vtanh.pop %v474
    %v489 = vmul.f32 %v484, %v389
    %v490 = vmul.f32 %v486, %v390
    %493 = vrot.lane.b32.xlu0 %v487, 64
    %v494 = vpop.permute.xlu0 %493
    %495 = vrot.lane.b32.xlu0 %v488, 64
    %v496 = vpop.permute.xlu0 %495
    %v499 = vmul.f32 %v484, %v494
    %v500 = vmul.f32 %v486, %v496
    %503 = vrot.lane.b32.xlu0 %v499, 32
    %v504 = vpop.permute.xlu0 %503
    %505 = vrot.lane.b32.xlu0 %v500, 32
    %v506 = vpop.permute.xlu0 %505
    %v509 = vadd.f32 %v489, %v504
    %v510 = vadd.f32 %v490, %v506
    %v511 = vtanh.pop %v509
    %v512 = vtanh.pop %v510
    %515 = vrot.lane.b32.xlu0 %v511, 64
    %v516 = vpop.permute.xlu0 %515
    %517 = vrot.lane.b32.xlu0 %v512, 64
    %v518 = vpop.permute.xlu0 %517
    %v521 = vmul.f32 %v484, %v516
    %v522 = vmul.f32 %v486, %v518
    %525 = vrot.lane.b32.xlu0 %v521, 32
    %v526 = vpop.permute.xlu0 %525
    %527 = vrot.lane.b32.xlu0 %v522, 32
    %v528 = vpop.permute.xlu0 %527
    %531 = vst.msk [vmem:[#allocation3 + $0x2] sm:$0x1] %vm289, %v526
    %532 = vst.msk [vmem:[#allocation3 + $0xa] sm:$0x1] %vm289, %v528
    %v533 = vld [vmem:[#allocation2 + $0x3] sm:$0x1]
    %v534 = vld [vmem:[#allocation2 + $0xb] sm:$0x1]
    %v535 = vpack.c.bf16 %v521, %v521
    %v536 = vpack.c.bf16 %v522, %v522
    %v539 = vunpack.c.l.b16 %v535
    %v540 = vunpack.c.l.b16 %v536
    %v541 = vrot.slane %v540, 7
    %v542 = vsel %vm301, %v541, %v539
    %v543 = vpack.c.b16 %v542, %v542
    %544 = vrot.lane.b32.xlu0 %v543, 32
    %v545 = vpop.permute.xlu0 %544
    %v547 = vsel %vm183, %v545, 0
    %549 = vmatprep.subr.bf16.mxu0 0
    %550 = vmatpush1.bf16.msra.mxu0 0
    %551 = vmatprep.subr.bf16.mxu0 0
    %552 = vmatpush1.bf16.msra.mxu0 0
    %553 = vmatprep.subr.bf16.mxu0 0
    %554 = vmatpush1.bf16.msra.mxu0 0
    %555 = vmatprep.subr.bf16.mxu0 0
    %556 = vmatpush1.bf16.msra.mxu0 0
    %557 = vmatprep.subr.bf16.mxu0 0
    %558 = vmatpush1.bf16.msra.mxu0 0
    %559 = vmatprep.subr.bf16.mxu0 0
    %560 = vmatpush1.bf16.msra.mxu0 0
    %561 = vmatprep.subr.bf16.mxu0 0
    %562 = vmatpush1.bf16.msra.mxu0 %v180
    %563 = vmatprep.subr.bf16.mxu0 0
    %564 = vmatpush1.bf16.msra.mxu0 %v179
    %565 = vmatprep.subr.bf16.mxu0 0
    %566 = vmatpush2.bf16.msra.mxu0 0
    %567 = vmatprep.subr.bf16.mxu0 0
    %568 = vmatpush2.bf16.msra.mxu0 0
    %569 = vmatprep.subr.bf16.mxu0 0
    %570 = vmatpush2.bf16.msra.mxu0 0
    %571 = vmatprep.subr.bf16.mxu0 0
    %572 = vmatpush2.bf16.msra.mxu0 0
    %573 = vmatprep.subr.bf16.mxu0 0
    %574 = vmatpush2.bf16.msra.mxu0 0
    %575 = vmatprep.subr.bf16.mxu0 0
    %576 = vmatpush2.bf16.msra.mxu0 0
    %577 = vmatprep.subr.bf16.mxu0 0
    %578 = vmatpush2.bf16.msra.mxu0 0
    %579 = vmatprep.subr.bf16.mxu0 0
    %580 = vmatpush2.bf16.msra.mxu0 0
    %581 = vmatprep.mubr.bf16.mxu0 0
    %582 = vmatmul.mubr.bf16.gmra.mxu0 %v547
    %v583 = vpop.f32.mrf.mxu0
    %v584 = vadd.f32 0.0, %v583
    %v585 = vpop.f32.mrf.mxu0
    %v586 = vpop.f32.mrf.mxu0
    %v587 = vpop.f32.mrf.mxu0
    %588 = vdwg.mxu0
    %v590 = vrot.slane %v584, 1
    %v593 = vadd.f32 %v533, %v584
    %v594 = vadd.f32 %v534, %v590
    %v595 = vxor.u32 %v593, 2147483648
    %v596 = vxor.u32 %v594, 2147483648
    %v597 = vmul.f32 %v595, 1.442695
    %v598 = vpow.pop %v597
    %v599 = vmul.f32 %v596, 1.442695
    %v600 = vpow.pop %v599
    %v601 = vadd.f32 %v598, 1.0
    %v602 = vadd.f32 %v600, 1.0
    %v603 = vrcp.pop %v601
    %v604 = vmul.f32 1.0, %v603
    %v605 = vrcp.pop %v602
    %v606 = vmul.f32 1.0, %v605
    %v607 = vtanh.pop %v593
    %v608 = vtanh.pop %v594
    %v609 = vmul.f32 %v604, %v509
    %v610 = vmul.f32 %v606, %v510
    %613 = vrot.lane.b32.xlu0 %v607, 64
    %v614 = vpop.permute.xlu0 %613
    %615 = vrot.lane.b32.xlu0 %v608, 64
    %v616 = vpop.permute.xlu0 %615
    %v619 = vmul.f32 %v604, %v614
    %v620 = vmul.f32 %v606, %v616
    %623 = vrot.lane.b32.xlu0 %v619, 32
    %v624 = vpop.permute.xlu0 %623
    %625 = vrot.lane.b32.xlu0 %v620, 32
    %v626 = vpop.permute.xlu0 %625
    %v629 = vadd.f32 %v609, %v624
    %v630 = vadd.f32 %v610, %v626
    %v631 = vtanh.pop %v629
    %v632 = vtanh.pop %v630
    %635 = vrot.lane.b32.xlu0 %v631, 64
    %v636 = vpop.permute.xlu0 %635
    %637 = vrot.lane.b32.xlu0 %v632, 64
    %v638 = vpop.permute.xlu0 %637
    %v641 = vmul.f32 %v604, %v636
    %v642 = vmul.f32 %v606, %v638
    %645 = vrot.lane.b32.xlu0 %v641, 32
    %v646 = vpop.permute.xlu0 %645
    %647 = vrot.lane.b32.xlu0 %v642, 32
    %v648 = vpop.permute.xlu0 %647
    %651 = vst.msk [vmem:[#allocation3 + $0x3] sm:$0x1] %vm289, %v646
    %652 = vst.msk [vmem:[#allocation3 + $0xb] sm:$0x1] %vm289, %v648
    %v653 = vld [vmem:[#allocation2 + $0x4] sm:$0x1]
    %v654 = vld [vmem:[#allocation2 + $0xc] sm:$0x1]
    %v655 = vpack.c.bf16 %v641, %v641
    %v656 = vpack.c.bf16 %v642, %v642
    %v659 = vunpack.c.l.b16 %v655
    %v660 = vunpack.c.l.b16 %v656
    %v661 = vrot.slane %v660, 7
    %v662 = vsel %vm301, %v661, %v659
    %v663 = vpack.c.b16 %v662, %v662
    %664 = vrot.lane.b32.xlu0 %v663, 32
    %v665 = vpop.permute.xlu0 %664
    %v667 = vsel %vm183, %v665, 0
    %669 = vmatprep.subr.bf16.mxu0 0
    %670 = vmatpush1.bf16.msra.mxu0 0
    %671 = vmatprep.subr.bf16.mxu0 0
    %672 = vmatpush1.bf16.msra.mxu0 0
    %673 = vmatprep.subr.bf16.mxu0 0
    %674 = vmatpush1.bf16.msra.mxu0 0
    %675 = vmatprep.subr.bf16.mxu0 0
    %676 = vmatpush1.bf16.msra.mxu0 0
    %677 = vmatprep.subr.bf16.mxu0 0
    %678 = vmatpush1.bf16.msra.mxu0 0
    %679 = vmatprep.subr.bf16.mxu0 0
    %680 = vmatpush1.bf16.msra.mxu0 0
    %681 = vmatprep.subr.bf16.mxu0 0
    %682 = vmatpush1.bf16.msra.mxu0 %v180
    %683 = vmatprep.subr.bf16.mxu0 0
    %684 = vmatpush1.bf16.msra.mxu0 %v179
    %685 = vmatprep.subr.bf16.mxu0 0
    %686 = vmatpush2.bf16.msra.mxu0 0
    %687 = vmatprep.subr.bf16.mxu0 0
    %688 = vmatpush2.bf16.msra.mxu0 0
    %689 = vmatprep.subr.bf16.mxu0 0
    %690 = vmatpush2.bf16.msra.mxu0 0
    %691 = vmatprep.subr.bf16.mxu0 0
    %692 = vmatpush2.bf16.msra.mxu0 0
    %693 = vmatprep.subr.bf16.mxu0 0
    %694 = vmatpush2.bf16.msra.mxu0 0
    %695 = vmatprep.subr.bf16.mxu0 0
    %696 = vmatpush2.bf16.msra.mxu0 0
    %697 = vmatprep.subr.bf16.mxu0 0
    %698 = vmatpush2.bf16.msra.mxu0 0
    %699 = vmatprep.subr.bf16.mxu0 0
    %700 = vmatpush2.bf16.msra.mxu0 0
    %701 = vmatprep.mubr.bf16.mxu0 0
    %702 = vmatmul.mubr.bf16.gmra.mxu0 %v667
    %v703 = vpop.f32.mrf.mxu0
    %v704 = vadd.f32 0.0, %v703
    %v705 = vpop.f32.mrf.mxu0
    %v706 = vpop.f32.mrf.mxu0
    %v707 = vpop.f32.mrf.mxu0
    %708 = vdwg.mxu0
    %v710 = vrot.slane %v704, 1
    %v713 = vadd.f32 %v653, %v704
    %v714 = vadd.f32 %v654, %v710
    %v715 = vxor.u32 %v713, 2147483648
    %v716 = vxor.u32 %v714, 2147483648
    %v717 = vmul.f32 %v715, 1.442695
    %v718 = vpow.pop %v717
    %v719 = vmul.f32 %v716, 1.442695
    %v720 = vpow.pop %v719
    %v721 = vadd.f32 %v718, 1.0
    %v722 = vadd.f32 %v720, 1.0
    %v723 = vrcp.pop %v721
    %v724 = vmul.f32 1.0, %v723
    %v725 = vrcp.pop %v722
    %v726 = vmul.f32 1.0, %v725
    %v727 = vtanh.pop %v713
    %v728 = vtanh.pop %v714
    %v729 = vmul.f32 %v724, %v629
    %v730 = vmul.f32 %v726, %v630
    %733 = vrot.lane.b32.xlu0 %v727, 64
    %v734 = vpop.permute.xlu0 %733
    %735 = vrot.lane.b32.xlu0 %v728, 64
    %v736 = vpop.permute.xlu0 %735
    %v739 = vmul.f32 %v724, %v734
    %v740 = vmul.f32 %v726, %v736
    %743 = vrot.lane.b32.xlu0 %v739, 32
    %v744 = vpop.permute.xlu0 %743
    %745 = vrot.lane.b32.xlu0 %v740, 32
    %v746 = vpop.permute.xlu0 %745
    %v749 = vadd.f32 %v729, %v744
    %v750 = vadd.f32 %v730, %v746
    %v751 = vtanh.pop %v749
    %v752 = vtanh.pop %v750
    %755 = vrot.lane.b32.xlu0 %v751, 64
    %v756 = vpop.permute.xlu0 %755
    %757 = vrot.lane.b32.xlu0 %v752, 64
    %v758 = vpop.permute.xlu0 %757
    %v761 = vmul.f32 %v724, %v756
    %v762 = vmul.f32 %v726, %v758
    %765 = vrot.lane.b32.xlu0 %v761, 32
    %v766 = vpop.permute.xlu0 %765
    %767 = vrot.lane.b32.xlu0 %v762, 32
    %v768 = vpop.permute.xlu0 %767
    %771 = vst.msk [vmem:[#allocation3 + $0x4] sm:$0x1] %vm289, %v766
    %772 = vst.msk [vmem:[#allocation3 + $0xc] sm:$0x1] %vm289, %v768
    %v773 = vld [vmem:[#allocation2 + $0x5] sm:$0x1]
    %v774 = vld [vmem:[#allocation2 + $0xd] sm:$0x1]
    %v775 = vpack.c.bf16 %v761, %v761
    %v776 = vpack.c.bf16 %v762, %v762
    %v779 = vunpack.c.l.b16 %v775
    %v780 = vunpack.c.l.b16 %v776
    %v781 = vrot.slane %v780, 7
    %v782 = vsel %vm301, %v781, %v779
    %v783 = vpack.c.b16 %v782, %v782
    %784 = vrot.lane.b32.xlu0 %v783, 32
    %v785 = vpop.permute.xlu0 %784
    %v787 = vsel %vm183, %v785, 0
    %789 = vmatprep.subr.bf16.mxu0 0
    %790 = vmatpush1.bf16.msra.mxu0 0
    %791 = vmatprep.subr.bf16.mxu0 0
    %792 = vmatpush1.bf16.msra.mxu0 0
    %793 = vmatprep.subr.bf16.mxu0 0
    %794 = vmatpush1.bf16.msra.mxu0 0
    %795 = vmatprep.subr.bf16.mxu0 0
    %796 = vmatpush1.bf16.msra.mxu0 0
    %797 = vmatprep.subr.bf16.mxu0 0
    %798 = vmatpush1.bf16.msra.mxu0 0
    %799 = vmatprep.subr.bf16.mxu0 0
    %800 = vmatpush1.bf16.msra.mxu0 0
    %801 = vmatprep.subr.bf16.mxu0 0
    %802 = vmatpush1.bf16.msra.mxu0 %v180
    %803 = vmatprep.subr.bf16.mxu0 0
    %804 = vmatpush1.bf16.msra.mxu0 %v179
    %805 = vmatprep.subr.bf16.mxu0 0
    %806 = vmatpush2.bf16.msra.mxu0 0
    %807 = vmatprep.subr.bf16.mxu0 0
    %808 = vmatpush2.bf16.msra.mxu0 0
    %809 = vmatprep.subr.bf16.mxu0 0
    %810 = vmatpush2.bf16.msra.mxu0 0
    %811 = vmatprep.subr.bf16.mxu0 0
    %812 = vmatpush2.bf16.msra.mxu0 0
    %813 = vmatprep.subr.bf16.mxu0 0
    %814 = vmatpush2.bf16.msra.mxu0 0
    %815 = vmatprep.subr.bf16.mxu0 0
    %816 = vmatpush2.bf16.msra.mxu0 0
    %817 = vmatprep.subr.bf16.mxu0 0
    %818 = vmatpush2.bf16.msra.mxu0 0
    %819 = vmatprep.subr.bf16.mxu0 0
    %820 = vmatpush2.bf16.msra.mxu0 0
    %821 = vmatprep.mubr.bf16.mxu0 0
    %822 = vmatmul.mubr.bf16.gmra.mxu0 %v787
    %v823 = vpop.f32.mrf.mxu0
    %v824 = vadd.f32 0.0, %v823
    %v825 = vpop.f32.mrf.mxu0
    %v826 = vpop.f32.mrf.mxu0
    %v827 = vpop.f32.mrf.mxu0
    %828 = vdwg.mxu0
    %v830 = vrot.slane %v824, 1
    %v833 = vadd.f32 %v773, %v824
    %v834 = vadd.f32 %v774, %v830
    %v835 = vxor.u32 %v833, 2147483648
    %v836 = vxor.u32 %v834, 2147483648
    %v837 = vmul.f32 %v835, 1.442695
    %v838 = vpow.pop %v837
    %v839 = vmul.f32 %v836, 1.442695
    %v840 = vpow.pop %v839
    %v841 = vadd.f32 %v838, 1.0
    %v842 = vadd.f32 %v840, 1.0
    %v843 = vrcp.pop %v841
    %v844 = vmul.f32 1.0, %v843
    %v845 = vrcp.pop %v842
    %v846 = vmul.f32 1.0, %v845
    %v847 = vtanh.pop %v833
    %v848 = vtanh.pop %v834
    %v849 = vmul.f32 %v844, %v749
    %v850 = vmul.f32 %v846, %v750
    %853 = vrot.lane.b32.xlu0 %v847, 64
    %v854 = vpop.permute.xlu0 %853
    %855 = vrot.lane.b32.xlu0 %v848, 64
    %v856 = vpop.permute.xlu0 %855
    %v859 = vmul.f32 %v844, %v854
    %v860 = vmul.f32 %v846, %v856
    %863 = vrot.lane.b32.xlu0 %v859, 32
    %v864 = vpop.permute.xlu0 %863
    %865 = vrot.lane.b32.xlu0 %v860, 32
    %v866 = vpop.permute.xlu0 %865
    %v869 = vadd.f32 %v849, %v864
    %v870 = vadd.f32 %v850, %v866
    %v871 = vtanh.pop %v869
    %v872 = vtanh.pop %v870
    %875 = vrot.lane.b32.xlu0 %v871, 64
    %v876 = vpop.permute.xlu0 %875
    %877 = vrot.lane.b32.xlu0 %v872, 64
    %v878 = vpop.permute.xlu0 %877
    %v881 = vmul.f32 %v844, %v876
    %v882 = vmul.f32 %v846, %v878
    %885 = vrot.lane.b32.xlu0 %v881, 32
    %v886 = vpop.permute.xlu0 %885
    %887 = vrot.lane.b32.xlu0 %v882, 32
    %v888 = vpop.permute.xlu0 %887
    %891 = vst.msk [vmem:[#allocation3 + $0x5] sm:$0x1] %vm289, %v886
    %892 = vst.msk [vmem:[#allocation3 + $0xd] sm:$0x1] %vm289, %v888
    %v893 = vld [vmem:[#allocation2 + $0x6] sm:$0x1]
    %v894 = vld [vmem:[#allocation2 + $0xe] sm:$0x1]
    %v895 = vpack.c.bf16 %v881, %v881
    %v896 = vpack.c.bf16 %v882, %v882
    %v899 = vunpack.c.l.b16 %v895
    %v900 = vunpack.c.l.b16 %v896
    %v901 = vrot.slane %v900, 7
    %v902 = vsel %vm301, %v901, %v899
    %v903 = vpack.c.b16 %v902, %v902
    %904 = vrot.lane.b32.xlu0 %v903, 32
    %v905 = vpop.permute.xlu0 %904
    %v907 = vsel %vm183, %v905, 0
    %909 = vmatprep.subr.bf16.mxu0 0
    %910 = vmatpush1.bf16.msra.mxu0 0
    %911 = vmatprep.subr.bf16.mxu0 0
    %912 = vmatpush1.bf16.msra.mxu0 0
    %913 = vmatprep.subr.bf16.mxu0 0
    %914 = vmatpush1.bf16.msra.mxu0 0
    %915 = vmatprep.subr.bf16.mxu0 0
    %916 = vmatpush1.bf16.msra.mxu0 0
    %917 = vmatprep.subr.bf16.mxu0 0
    %918 = vmatpush1.bf16.msra.mxu0 0
    %919 = vmatprep.subr.bf16.mxu0 0
    %920 = vmatpush1.bf16.msra.mxu0 0
    %921 = vmatprep.subr.bf16.mxu0 0
    %922 = vmatpush1.bf16.msra.mxu0 %v180
    %923 = vmatprep.subr.bf16.mxu0 0
    %924 = vmatpush1.bf16.msra.mxu0 %v179
    %925 = vmatprep.subr.bf16.mxu0 0
    %926 = vmatpush2.bf16.msra.mxu0 0
    %927 = vmatprep.subr.bf16.mxu0 0
    %928 = vmatpush2.bf16.msra.mxu0 0
    %929 = vmatprep.subr.bf16.mxu0 0
    %930 = vmatpush2.bf16.msra.mxu0 0
    %931 = vmatprep.subr.bf16.mxu0 0
    %932 = vmatpush2.bf16.msra.mxu0 0
    %933 = vmatprep.subr.bf16.mxu0 0
    %934 = vmatpush2.bf16.msra.mxu0 0
    %935 = vmatprep.subr.bf16.mxu0 0
    %936 = vmatpush2.bf16.msra.mxu0 0
    %937 = vmatprep.subr.bf16.mxu0 0
    %938 = vmatpush2.bf16.msra.mxu0 0
    %939 = vmatprep.subr.bf16.mxu0 0
    %940 = vmatpush2.bf16.msra.mxu0 0
    %941 = vmatprep.mubr.bf16.mxu0 0
    %942 = vmatmul.mubr.bf16.gmra.mxu0 %v907
    %v943 = vpop.f32.mrf.mxu0
    %v944 = vadd.f32 0.0, %v943
    %v945 = vpop.f32.mrf.mxu0
    %v946 = vpop.f32.mrf.mxu0
    %v947 = vpop.f32.mrf.mxu0
    %948 = vdwg.mxu0
    %v950 = vrot.slane %v944, 1
    %v953 = vadd.f32 %v893, %v944
    %v954 = vadd.f32 %v894, %v950
    %v955 = vxor.u32 %v953, 2147483648
    %v956 = vxor.u32 %v954, 2147483648
    %v957 = vmul.f32 %v955, 1.442695
    %v958 = vpow.pop %v957
    %v959 = vmul.f32 %v956, 1.442695
    %v960 = vpow.pop %v959
    %v961 = vadd.f32 %v958, 1.0
    %v962 = vadd.f32 %v960, 1.0
    %v963 = vrcp.pop %v961
    %v964 = vmul.f32 1.0, %v963
    %v965 = vrcp.pop %v962
    %v966 = vmul.f32 1.0, %v965
    %v967 = vtanh.pop %v953
    %v968 = vtanh.pop %v954
    %v969 = vmul.f32 %v964, %v869
    %v970 = vmul.f32 %v966, %v870
    %973 = vrot.lane.b32.xlu0 %v967, 64
    %v974 = vpop.permute.xlu0 %973
    %975 = vrot.lane.b32.xlu0 %v968, 64
    %v976 = vpop.permute.xlu0 %975
    %v979 = vmul.f32 %v964, %v974
    %v980 = vmul.f32 %v966, %v976
    %983 = vrot.lane.b32.xlu0 %v979, 32
    %v984 = vpop.permute.xlu0 %983
    %985 = vrot.lane.b32.xlu0 %v980, 32
    %v986 = vpop.permute.xlu0 %985
    %v989 = vadd.f32 %v969, %v984
    %v990 = vadd.f32 %v970, %v986
    %v991 = vtanh.pop %v989
    %v992 = vtanh.pop %v990
    %995 = vrot.lane.b32.xlu0 %v991, 64
    %v996 = vpop.permute.xlu0 %995
    %997 = vrot.lane.b32.xlu0 %v992, 64
    %v998 = vpop.permute.xlu0 %997
    %v1001 = vmul.f32 %v964, %v996
    %v1002 = vmul.f32 %v966, %v998
    %1005 = vrot.lane.b32.xlu0 %v1001, 32
    %v1006 = vpop.permute.xlu0 %1005
    %1007 = vrot.lane.b32.xlu0 %v1002, 32
    %v1008 = vpop.permute.xlu0 %1007
    %1011 = vst.msk [vmem:[#allocation3 + $0x6] sm:$0x1] %vm289, %v1006
    %1012 = vst.msk [vmem:[#allocation3 + $0xe] sm:$0x1] %vm289, %v1008
    %v1013 = vld [vmem:[#allocation2 + $0x7] sm:$0x1]
    %v1014 = vld [vmem:[#allocation2 + $0xf] sm:$0x1]
    %v1015 = vpack.c.bf16 %v1001, %v1001
    %v1016 = vpack.c.bf16 %v1002, %v1002
    %v1019 = vunpack.c.l.b16 %v1015
    %v1020 = vunpack.c.l.b16 %v1016
    %v1021 = vrot.slane %v1020, 7
    %v1022 = vsel %vm301, %v1021, %v1019
    %v1023 = vpack.c.b16 %v1022, %v1022
    %1024 = vrot.lane.b32.xlu0 %v1023, 32
    %v1025 = vpop.permute.xlu0 %1024
    %v1027 = vsel %vm183, %v1025, 0
    %1029 = vmatprep.subr.bf16.mxu0 0
    %1030 = vmatpush1.bf16.msra.mxu0 0
    %1031 = vmatprep.subr.bf16.mxu0 0
    %1032 = vmatpush1.bf16.msra.mxu0 0
    %1033 = vmatprep.subr.bf16.mxu0 0
    %1034 = vmatpush1.bf16.msra.mxu0 0
    %1035 = vmatprep.subr.bf16.mxu0 0
    %1036 = vmatpush1.bf16.msra.mxu0 0
    %1037 = vmatprep.subr.bf16.mxu0 0
    %1038 = vmatpush1.bf16.msra.mxu0 0
    %1039 = vmatprep.subr.bf16.mxu0 0
    %1040 = vmatpush1.bf16.msra.mxu0 0
    %1041 = vmatprep.subr.bf16.mxu0 0
    %1042 = vmatpush1.bf16.msra.mxu0 %v180
    %1043 = vmatprep.subr.bf16.mxu0 0
    %1044 = vmatpush1.bf16.msra.mxu0 %v179
    %1045 = vmatprep.subr.bf16.mxu0 0
    %1046 = vmatpush2.bf16.msra.mxu0 0
    %1047 = vmatprep.subr.bf16.mxu0 0
    %1048 = vmatpush2.bf16.msra.mxu0 0
    %1049 = vmatprep.subr.bf16.mxu0 0
    %1050 = vmatpush2.bf16.msra.mxu0 0
    %1051 = vmatprep.subr.bf16.mxu0 0
    %1052 = vmatpush2.bf16.msra.mxu0 0
    %1053 = vmatprep.subr.bf16.mxu0 0
    %1054 = vmatpush2.bf16.msra.mxu0 0
    %1055 = vmatprep.subr.bf16.mxu0 0
    %1056 = vmatpush2.bf16.msra.mxu0 0
    %1057 = vmatprep.subr.bf16.mxu0 0
    %1058 = vmatpush2.bf16.msra.mxu0 0
    %1059 = vmatprep.subr.bf16.mxu0 0
    %1060 = vmatpush2.bf16.msra.mxu0 0
    %1061 = vmatprep.mubr.bf16.mxu0 0
    %1062 = vmatmul.mubr.bf16.gmra.mxu0 %v1027
    %v1063 = vpop.f32.mrf.mxu0
    %v1064 = vadd.f32 0.0, %v1063
    %v1065 = vpop.f32.mrf.mxu0
    %v1066 = vpop.f32.mrf.mxu0
    %v1067 = vpop.f32.mrf.mxu0
    %1068 = vdwg.mxu0
    %v1070 = vrot.slane %v1064, 1
    %v1073 = vadd.f32 %v1013, %v1064
    %v1074 = vadd.f32 %v1014, %v1070
    %v1075 = vxor.u32 %v1073, 2147483648
    %v1076 = vxor.u32 %v1074, 2147483648
    %v1077 = vmul.f32 %v1075, 1.442695
    %v1078 = vpow.pop %v1077
    %v1079 = vmul.f32 %v1076, 1.442695
    %v1080 = vpow.pop %v1079
    %v1081 = vadd.f32 %v1078, 1.0
    %v1082 = vadd.f32 %v1080, 1.0
    %v1083 = vrcp.pop %v1081
    %v1084 = vmul.f32 1.0, %v1083
    %v1085 = vrcp.pop %v1082
    %v1086 = vmul.f32 1.0, %v1085
    %v1087 = vtanh.pop %v1073
    %v1088 = vtanh.pop %v1074
    %v1089 = vmul.f32 %v1084, %v989
    %v1090 = vmul.f32 %v1086, %v990
    %1093 = vrot.lane.b32.xlu0 %v1087, 64
    %v1094 = vpop.permute.xlu0 %1093
    %1095 = vrot.lane.b32.xlu0 %v1088, 64
    %v1096 = vpop.permute.xlu0 %1095
    %v1099 = vmul.f32 %v1084, %v1094
    %v1100 = vmul.f32 %v1086, %v1096
    %1103 = vrot.lane.b32.xlu0 %v1099, 32
    %v1104 = vpop.permute.xlu0 %1103
    %1105 = vrot.lane.b32.xlu0 %v1100, 32
    %v1106 = vpop.permute.xlu0 %1105
    %v1109 = vadd.f32 %v1089, %v1104
    %v1110 = vadd.f32 %v1090, %v1106
    %v1111 = vtanh.pop %v1109
    %v1112 = vtanh.pop %v1110
    %1115 = vrot.lane.b32.xlu0 %v1111, 64
    %v1116 = vpop.permute.xlu0 %1115
    %1117 = vrot.lane.b32.xlu0 %v1112, 64
    %v1118 = vpop.permute.xlu0 %1117
    %v1121 = vmul.f32 %v1084, %v1116
    %v1122 = vmul.f32 %v1086, %v1118
    %1125 = vrot.lane.b32.xlu0 %v1121, 32
    %v1126 = vpop.permute.xlu0 %1125
    %1127 = vrot.lane.b32.xlu0 %v1122, 32
    %v1128 = vpop.permute.xlu0 %1127
    %1131 = vst.msk [vmem:[#allocation3 + $0x7] sm:$0x1] %vm289, %v1126
    %1132 = vst.msk [vmem:[#allocation3 + $0xf] sm:$0x1] %vm289, %v1128
    %v1133 = vld [vmem:[#allocation3] sm:$0xff]
    %v1134 = vld [vmem:[#allocation3 + $0x8] sm:$0xff]
    %v1135 = vpack.c.bf16 %v1134, %v1133
    %v1136 = vld [vmem:[%s6] sm:$0xf]
    %v1137 = vld [vmem:[%s6 + $0x4] sm:$0xf]
    %v1138 = vld [vmem:[%s6 + $0x8] sm:$0xf]
    %v1139 = vld [vmem:[%s6 + $0xc] sm:$0xf]
    %v1140 = vld [vmem:[%s7] sm:$0x1]
    %v1142 = vlaneseq
    %v1143 = vshrl.u32 %v1142, 7
    %v1144 = vsub.s32 0, %v1143
    %v1145 = vrot.slane %v1140, %v1144
    %v1151 = vunpack.c.l.b16 %v1136
    %v1152 = vunpack.c.l.b16 %v1137
    %v1153 = vunpack.c.l.b16 %v1138
    %v1154 = vunpack.c.l.b16 %v1139
    %v1155 = vpack.c.b16 %v1152, %v1151
    %v1156 = vpack.c.b16 %v1154, %v1153
    %v1160 = vsel %vm183, %v1135, 0
    %1162 = vmatprep.subr.bf16.mxu0 0
    %1163 = vmatpush1.bf16.msra.mxu0 0
    %1164 = vmatprep.subr.bf16.mxu0 0
    %1165 = vmatpush1.bf16.msra.mxu0 0
    %1166 = vmatprep.subr.bf16.mxu0 0
    %1167 = vmatpush1.bf16.msra.mxu0 0
    %1168 = vmatprep.subr.bf16.mxu0 0
    %1169 = vmatpush1.bf16.msra.mxu0 0
    %1170 = vmatprep.subr.bf16.mxu0 0
    %1171 = vmatpush1.bf16.msra.mxu0 0
    %1172 = vmatprep.subr.bf16.mxu0 0
    %1173 = vmatpush1.bf16.msra.mxu0 0
    %1174 = vmatprep.subr.bf16.mxu0 0
    %1175 = vmatpush1.bf16.msra.mxu0 %v1156
    %1176 = vmatprep.subr.bf16.mxu0 0
    %1177 = vmatpush1.bf16.msra.mxu0 %v1155
    %1178 = vmatprep.subr.bf16.mxu0 0
    %1179 = vmatpush2.bf16.msra.mxu0 0
    %1180 = vmatprep.subr.bf16.mxu0 0
    %1181 = vmatpush2.bf16.msra.mxu0 0
    %1182 = vmatprep.subr.bf16.mxu0 0
    %1183 = vmatpush2.bf16.msra.mxu0 0
    %1184 = vmatprep.subr.bf16.mxu0 0
    %1185 = vmatpush2.bf16.msra.mxu0 0
    %1186 = vmatprep.subr.bf16.mxu0 0
    %1187 = vmatpush2.bf16.msra.mxu0 0
    %1188 = vmatprep.subr.bf16.mxu0 0
    %1189 = vmatpush2.bf16.msra.mxu0 0
    %1190 = vmatprep.subr.bf16.mxu0 0
    %1191 = vmatpush2.bf16.msra.mxu0 0
    %1192 = vmatprep.subr.bf16.mxu0 0
    %1193 = vmatpush2.bf16.msra.mxu0 0
    %1194 = vmatprep.mubr.bf16.mxu0 0
    %1195 = vmatmul.mubr.bf16.gmra.mxu0 %v1160
    %v1196 = vpop.f32.mrf.mxu0
    %v1197 = vadd.f32 %v1145, %v1196
    %v1198 = vpop.f32.mrf.mxu0
    %v1199 = vpop.f32.mrf.mxu0
    %v1200 = vadd.f32 %v1145, %v1199
    %v1201 = vpop.f32.mrf.mxu0
    %1202 = vdwg.mxu0
    %v1203 = vxor.u32 %v1197, 2147483648
    %v1204 = vxor.u32 %v1200, 2147483648
    %v1205 = vmul.f32 %v1203, 1.442695
    %v1206 = vpow.pop %v1205
    %v1207 = vmul.f32 %v1204, 1.442695
    %v1208 = vpow.pop %v1207
    %v1209 = vadd.f32 %v1206, 1.0
    %v1210 = vadd.f32 %v1208, 1.0
    %v1211 = vrcp.pop %v1209
    %v1212 = vmul.f32 1.0, %v1211
    %v1213 = vrcp.pop %v1210
    %v1214 = vmul.f32 1.0, %v1213
    %1215 = vst [vmem:[#allocation4] sm:$0xff] %v1212
    %1216 = vst [vmem:[#allocation4 + $0x8] sm:$0xff] %v1214
    // Predicated region
    $region34: #{embedding_dkt_forward.1} parent=1 // pred_check
      _
    $region35: #{embedding_dkt_forward.1} parent=1 // pred_check_branch
      %1218 = sbr.rel (0) target = $region37
    $region36: #{embedding_dkt_forward.1} parent=1 // pred_region
      %s1220 = ssub.s32 256, 256
      %1221 = vsyncadd [#allocation5], %s1220
      %s1222 = sshll.u32 [#allocation4], 4
      %s1223 = int_to_ptr.vmem [resolvable:$true] %s1222
      %1228 = dma.vmem_to_hbm [thread:$0]  %s1223, 256, %s8, [#allocation5], 128, 128, 8
    $region37: #{embedding_dkt_forward.1} parent=1 // pred_fallthru
      _
    // Predicated region
    $region38: #{embedding_dkt_forward.1} parent=1 // pred_check
      _
    $region39: #{embedding_dkt_forward.1} parent=1 // pred_check_branch
      %1230 = sbr.rel (0) target = $region41
    $region40: #{embedding_dkt_forward.1} parent=1 // pred_region
      %1231 = dma.done [#allocation5], 256
    $region41: #{embedding_dkt_forward.1} parent=1 // pred_fallthru
      _
    %1232 = vsyncpa [#allocation5], 1

</llo_original>
